<compile_context>
chip_gen: v7x
topology: tpu7x:2x2x1
jax: 0.10.0
libtpu: 0.0.40
codegen_flags: <defaults>
</compile_context>

<pallas_src>
import numpy as np

import jax
import jax.numpy as jnp
from jax.experimental import pallas as pl
from jax.experimental.pallas import tpu as pltpu

SUBLANE_BF16 = 16   # bf16 packs 16 rows per vreg; keep batch tiles multiples of this
TB_MAX = 512        # largest batch tile (VMEM-cheap; amortizes ~0.35us/grid-step)


# ----------------------------- schedule (parity with __init__) ---------------
def cosine_beta_schedule(timesteps, s=0.008):
    steps = timesteps + 1
    x = np.linspace(0, timesteps, steps, dtype=np.float64)
    alphas_cumprod = np.cos((x / timesteps + s) / (1 + s) * np.pi * 0.5) ** 2
    alphas_cumprod = alphas_cumprod / alphas_cumprod[0]
    betas = 1 - alphas_cumprod[1:] / alphas_cumprod[:-1]
    return np.clip(betas, 0, 0.999)


def _round_up(n, m):
    return ((n + m - 1) // m) * m


# ----------------------------- Pallas kernel ---------------------------------
def _net_kernel(xt_ref, w1_ref, b1_ref, w2_ref, b2_ref, w3_ref, b3_ref, o_ref):
    """One batch tile of net([x, t/n_steps]): 3-layer MLP, bf16 MXU / f32 accum."""
    # Layer 1: the scaled timestep is already column D of xt, so this is a single
    # MXU matmul (K = dim+1) instead of matmul + VPU rank-1 update.
    h = jnp.dot(xt_ref[...], w1_ref[...], preferred_element_type=jnp.float32)
    h = jax.nn.gelu(h + b1_ref[...], approximate=True)          # tanh -> EUP slot

    # Layer 2
    h = jnp.dot(h.astype(jnp.bfloat16), w2_ref[...],
                preferred_element_type=jnp.float32)
    h = jax.nn.gelu(h + b2_ref[...], approximate=True)

    # Layer 3 (output, stored at the true dim; no padded lanes to slice off later)
    out = jnp.dot(h.astype(jnp.bfloat16), w3_ref[...],
                  preferred_element_type=jnp.float32)
    o_ref[...] = (out + b3_ref[...]).astype(o_ref.dtype)


# ----------------------------- model wrapper ---------------------------------
class PortableDiffusionModelPallas:
    """Forward pass of PortableDiffusionModel with an MLP `net`, on Pallas/TPU."""

    def __init__(self, dim, n_steps, hidden=256, seed=0):
        assert hidden % 128 == 0, "hidden must be a multiple of 128"
        self._dim = dim
        self._n_steps = n_steps
        self._hidden = hidden

        # Diffusion buffers (unused by forward; kept for parity + the sample loop).
        betas = jnp.asarray(cosine_beta_schedule(n_steps), jnp.float32)
        alphas = 1.0 - betas
        ac = jnp.cumprod(alphas)
        acp = jnp.concatenate([jnp.ones((1,), jnp.float32), ac[:-1]])
        self._betas = betas
        self._alphas = alphas
        self._alphas_cumprod = ac
        self._sqrt_recip_alphas_cumprod = 1.0 / jnp.sqrt(ac)
        self._sqrt_recipm1_alphas_cumprod = jnp.sqrt(1.0 / ac - 1.0)
        self._posterior_mean_coef1 = betas * jnp.sqrt(acp) / (1.0 - ac)
        self._posterior_mean_coef2 = (1.0 - acp) * jnp.sqrt(alphas) / (1.0 - ac)
        self.out_logvar = jnp.log(betas)                       # var_type='learned'

        # Deterministic synthetic `net`:
        #   Linear(dim+1, H) -> GELU -> Linear(H, H) -> GELU -> Linear(H, dim)
        # Weights stored bf16 (half the HBM->VMEM DMA, native MXU path), f32 biases.
        key = jax.random.PRNGKey(seed)
        k1, k2, k3 = jax.random.split(key, 3)
        D, H = dim, hidden
        self._w1 = (jax.random.normal(k1, (D + 1, H), jnp.float32)
                    / np.sqrt(D + 1)).astype(jnp.bfloat16)     # (D+1, H) bf16
        self._b1 = jnp.zeros((1, H), jnp.float32)
        self._w2 = (jax.random.normal(k2, (H, H), jnp.float32)
                    / np.sqrt(H)).astype(jnp.bfloat16)         # (H, H)  bf16
        self._b2 = jnp.zeros((1, H), jnp.float32)
        self._w3 = (jax.random.normal(k3, (H, D), jnp.float32)
                    / np.sqrt(H)).astype(jnp.bfloat16)         # (H, D)  bf16
        self._b3 = jnp.zeros((1, D), jnp.float32)

        self._forward_jit = jax.jit(self._forward_impl)

    # -- batch tiling ----------------------------------------------------------
    @staticmethod
    def _tiles(B):
        """Pick (tile, padded batch, #tiles).  Big tiles amortize the ~0.35us
        per-grid-step overhead; keep >=2 tiles when the batch allows so
        dimension_semantics=("parallel",) can shard over both v7x TensorCores."""
        Bp = _round_up(max(B, 1), SUBLANE_BF16)
        n_tiles = pl.cdiv(Bp, TB_MAX)
        if n_tiles == 1 and Bp >= 256:
            n_tiles = 2
        TB = _round_up(pl.cdiv(Bp, n_tiles), SUBLANE_BF16)
        return TB, TB * n_tiles, n_tiles

    # -- the actual pallas_call (traced under jit) -----------------------------
    def _forward_impl(self, x, t):
        x = jnp.atleast_2d(x).astype(jnp.float32)          # torch.atleast_2d
        t = jnp.atleast_1d(t).astype(jnp.float32)          # torch.atleast_1d
        B, D = x.shape
        assert D == self._dim
        if t.shape[0] != B:
            t = jnp.broadcast_to(t, (B,))
        tf = (t / self._n_steps).reshape(B, 1)             # t / n_steps (exact parity)

        H = self._hidden
        TB, Bp, n_tiles = self._tiles(B)

        # Fold the scaled timestep into the last input column and cast to bf16 in
        # one small fused XLA op (~B*(D+1)*2 bytes) -- no full 128-lane f32 pad pass.
        xt = jnp.concatenate([x, tf], axis=1).astype(jnp.bfloat16)   # (B, D+1)
        if Bp != B:
            xt = jnp.pad(xt, ((0, Bp - B), (0, 0)))

        # Weights/biases have constant index_maps -> Pallas DMAs them once and they
        # stay VMEM-resident across the grid.  (Single-buffering them would halve
        # their VMEM footprint, but at H=256 that's ~0.3 MiB and not worth it.)
        resident = lambda shape: pl.BlockSpec(shape, lambda i: (0, 0))

        cost = pl.CostEstimate(
            flops=2 * Bp * ((D + 1) * H + H * H + H * D),
            transcendentals=2 * Bp * H,
            bytes_accessed=(Bp * (D + 1) * 2                       # xt (bf16)
                            + ((D + 1) * H + H * H + H * D) * 2    # bf16 weights
                            + (2 * H + D) * 4                      # biases
                            + Bp * D * 4))                         # out (f32)

        out = pl.pallas_call(
            _net_kernel,
            out_shape=jax.ShapeDtypeStruct((Bp, D), jnp.float32),
            grid=(n_tiles,),
            in_specs=[
                pl.BlockSpec((TB, D + 1), lambda i: (i, 0)),   # [x | t/n_steps] bf16
                resident((D + 1, H)),                          # W1 (VMEM-resident)
                resident((1, H)),                              # b1
                resident((H, H)),                              # W2
                resident((1, H)),                              # b2
                resident((H, D)),                              # W3
                resident((1, D)),                              # b3
            ],
            out_specs=pl.BlockSpec((TB, D), lambda i: (i, 0)),
            compiler_params=pltpu.CompilerParams(
                # batch tiles are independent -> megacore-shardable (v7x 2 TCs)
                dimension_semantics=("parallel",),
                vmem_limit_bytes=32 * 1024 * 1024),
            cost_estimate=cost,
        )(xt, self._w1, self._b1, self._w2, self._b2, self._w3, self._b3)

        return out if Bp == B else out[:B]

    def forward(self, x, t):
        """mu_{t-1} prediction network output given x_t (matches torch forward)."""
        return self._forward_jit(x, t)

    # -- full reverse-diffusion loop under one jit + lax.scan -------------------
    def sample(self, n, key):
        """p_sample loop over all timesteps (var_type='learned', clip=inf) driven by
        lax.scan inside a single jit, so the Pallas-kernel weights stay
        device-resident and dispatch/pad overhead is paid once, not n_steps times."""
        @jax.jit
        def _run(key):
            kx, kn = jax.random.split(key)
            x0 = jax.random.normal(kx, (n, self._dim), jnp.float32)
            noise_keys = jax.random.split(kn, self._n_steps)
            ts = jnp.arange(self._n_steps - 1, -1, -1)

            def step(x, inp):
                i, k = inp
                t_vec = jnp.full((n,), i, jnp.float32)
                eps = self._forward_impl(x, t_vec)                     # Pallas net
                x0_hat = (self._sqrt_recip_alphas_cumprod[i] * x
                          - self._sqrt_recipm1_alphas_cumprod[i] * eps)
                mean = (self._posterior_mean_coef1[i] * x0_hat
                        + self._posterior_mean_coef2[i] * x)
                log_var = self.out_logvar[i]
                noise = jax.random.normal(k, x.shape, x.dtype)
                return mean + jnp.exp(0.5 * log_var) * noise, None

            x, _ = jax.lax.scan(step, x0, (ts, noise_keys))
            return x

        return _run(key)

    # -- pure-JAX reference (emulates the kernel's bf16 operand rounding) ------
    def forward_ref(self, x, t):
        q = lambda v: v.astype(jnp.bfloat16).astype(jnp.float32)
        x = jnp.atleast_2d(x).astype(jnp.float32)
        t = jnp.atleast_1d(t).astype(jnp.float32)
        tf = (t / self._n_steps).reshape(-1, 1)
        xt = q(jnp.concatenate([x, tf], axis=1))
        h = jax.nn.gelu(xt @ self._w1.astype(jnp.float32) + self._b1,
                        approximate=True)
        h = jax.nn.gelu(q(h) @ self._w2.astype(jnp.float32) + self._b2,
                        approximate=True)
        return q(h) @ self._w3.astype(jnp.float32) + self._b3


# ----------------------------- demo / test -----------------------------------
if __name__ == "__main__":
    DIM = 32
    N_STEPS = 100
    BATCH = 256

    # TODO(synk): losses / ELBO (p_loss_*, logpx, q_*) from the torch module are
    # training-time utilities and are not implemented here.
    model = PortableDiffusionModelPallas(dim=DIM, n_steps=N_STEPS, hidden=256)

    key = jax.random.PRNGKey(0)
    kx, kt, ks = jax.random.split(key, 3)
    x = jax.random.normal(kx, (BATCH, DIM), jnp.float32)
    t = jax.random.randint(kt, (BATCH,), 0, N_STEPS, dtype=jnp.int32)

    out = jax.block_until_ready(model.forward(x, t))
    ref = model.forward_ref(x, t)
    assert out.shape == (BATCH, DIM)
    np.testing.assert_allclose(np.asarray(out), np.asarray(ref),
                               rtol=1e-2, atol=1e-2)

    # Exercise the kernel n_steps times inside one jit/scan (device-resident weights).
    samples = jax.block_until_ready(model.sample(16, ks))
    assert samples.shape == (16, DIM)
    assert bool(jnp.all(jnp.isfinite(samples)))

    print("KERNEL_OK")
</pallas_src>

<mosaic_0001>
module attributes {stable_mosaic.version = 11 : i64} {
  func.func @_net_kernel(%arg0: i32, %arg1: memref<128x33xbf16, #tpu.memory_space<vmem>>, %arg2: memref<33x256xbf16, #tpu.memory_space<vmem>>, %arg3: memref<1x256xf32, #tpu.memory_space<vmem>>, %arg4: memref<256x256xbf16, #tpu.memory_space<vmem>>, %arg5: memref<1x256xf32, #tpu.memory_space<vmem>>, %arg6: memref<256x32xbf16, #tpu.memory_space<vmem>>, %arg7: memref<1x32xf32, #tpu.memory_space<vmem>>, %arg8: memref<128x32xf32, #tpu.memory_space<vmem>>) attributes {dimension_semantics = [#tpu.dimension_semantics<parallel>], iteration_bounds = array<i64: 2>, scalar_prefetch = 0 : i64, scratch_operands = 0 : i64, tpu.core_type = #tpu.core_type<tc>, window_params = [{transform_indices = @transform_0, window_bounds = array<i64: 128, 33>}, {pipeline_mode = #tpu.pipeline_mode<synchronous>, transform_indices = @transform_1, window_bounds = array<i64: 33, 256>}, {pipeline_mode = #tpu.pipeline_mode<synchronous>, transform_indices = @transform_2, window_bounds = array<i64: 1, 256>}, {pipeline_mode = #tpu.pipeline_mode<synchronous>, transform_indices = @transform_3, window_bounds = array<i64: 256, 256>}, {pipeline_mode = #tpu.pipeline_mode<synchronous>, transform_indices = @transform_4, window_bounds = array<i64: 1, 256>}, {pipeline_mode = #tpu.pipeline_mode<synchronous>, transform_indices = @transform_5, window_bounds = array<i64: 256, 32>}, {pipeline_mode = #tpu.pipeline_mode<synchronous>, transform_indices = @transform_6, window_bounds = array<i64: 1, 32>}, {transform_indices = @transform_7, window_bounds = array<i64: 128, 32>}]} {
    %c0 = arith.constant 0 : index
    %c0_0 = arith.constant 0 : index
    %0 = vector.load %arg1[%c0, %c0_0] : memref<128x33xbf16, #tpu.memory_space<vmem>>, vector<128x33xbf16>
    %c0_1 = arith.constant 0 : index
    %c0_2 = arith.constant 0 : index
    %1 = vector.load %arg2[%c0_1, %c0_2] : memref<33x256xbf16, #tpu.memory_space<vmem>>, vector<33x256xbf16>
    %cst = arith.constant dense<0.000000e+00> : vector<128x256xf32>
    %2 = tpu.matmul %0, %1, %cst {dimension_numbers = #tpu.dot_dimension_numbers<[1], [0], [0], [1], [0, 0, 1, 1], [], []>} : vector<128x33xbf16>, vector<33x256xbf16>, vector<128x256xf32> -> vector<128x256xf32>
    %c0_3 = arith.constant 0 : index
    %c0_4 = arith.constant 0 : index
    %3 = vector.load %arg3[%c0_3, %c0_4] : memref<1x256xf32, #tpu.memory_space<vmem>>, vector<1x256xf32>
    %4 = vector.broadcast %3 : vector<1x256xf32> to vector<128x256xf32>
    %5 = arith.addf %2, %4 : vector<128x256xf32>
    %6 = arith.mulf %5, %5 : vector<128x256xf32>
    %7 = arith.mulf %5, %6 : vector<128x256xf32>
    %cst_5 = arith.constant 4.471500e-02 : f32
    %8 = vector.broadcast %cst_5 : f32 to vector<128x256xf32>
    %9 = arith.mulf %8, %7 : vector<128x256xf32>
    %10 = arith.addf %5, %9 : vector<128x256xf32>
    %cst_6 = arith.constant 0.797884583 : f32
    %11 = vector.broadcast %cst_6 : f32 to vector<128x256xf32>
    %12 = arith.mulf %11, %10 : vector<128x256xf32>
    %13 = math.tanh %12 : vector<128x256xf32>
    %cst_7 = arith.constant 1.000000e+00 : f32
    %14 = vector.broadcast %cst_7 : f32 to vector<128x256xf32>
    %15 = arith.addf %14, %13 : vector<128x256xf32>
    %cst_8 = arith.constant 5.000000e-01 : f32
    %16 = vector.broadcast %cst_8 : f32 to vector<128x256xf32>
    %17 = arith.mulf %16, %15 : vector<128x256xf32>
    %18 = arith.mulf %5, %17 : vector<128x256xf32>
    %19 = arith.truncf %18 : vector<128x256xf32> to vector<128x256xbf16>
    %c0_9 = arith.constant 0 : index
    %c0_10 = arith.constant 0 : index
    %20 = vector.load %arg4[%c0_9, %c0_10] : memref<256x256xbf16, #tpu.memory_space<vmem>>, vector<256x256xbf16>
    %cst_11 = arith.constant dense<0.000000e+00> : vector<128x256xf32>
    %21 = tpu.matmul %19, %20, %cst_11 {dimension_numbers = #tpu.dot_dimension_numbers<[1], [0], [0], [1], [0, 0, 1, 1], [], []>} : vector<128x256xbf16>, vector<256x256xbf16>, vector<128x256xf32> -> vector<128x256xf32>
    %c0_12 = arith.constant 0 : index
    %c0_13 = arith.constant 0 : index
    %22 = vector.load %arg5[%c0_12, %c0_13] : memref<1x256xf32, #tpu.memory_space<vmem>>, vector<1x256xf32>
    %23 = vector.broadcast %22 : vector<1x256xf32> to vector<128x256xf32>
    %24 = arith.addf %21, %23 : vector<128x256xf32>
    %25 = arith.mulf %24, %24 : vector<128x256xf32>
    %26 = arith.mulf %24, %25 : vector<128x256xf32>
    %cst_14 = arith.constant 4.471500e-02 : f32
    %27 = vector.broadcast %cst_14 : f32 to vector<128x256xf32>
    %28 = arith.mulf %27, %26 : vector<128x256xf32>
    %29 = arith.addf %24, %28 : vector<128x256xf32>
    %cst_15 = arith.constant 0.797884583 : f32
    %30 = vector.broadcast %cst_15 : f32 to vector<128x256xf32>
    %31 = arith.mulf %30, %29 : vector<128x256xf32>
    %32 = math.tanh %31 : vector<128x256xf32>
    %cst_16 = arith.constant 1.000000e+00 : f32
    %33 = vector.broadcast %cst_16 : f32 to vector<128x256xf32>
    %34 = arith.addf %33, %32 : vector<128x256xf32>
    %cst_17 = arith.constant 5.000000e-01 : f32
    %35 = vector.broadcast %cst_17 : f32 to vector<128x256xf32>
    %36 = arith.mulf %35, %34 : vector<128x256xf32>
    %37 = arith.mulf %24, %36 : vector<128x256xf32>
    %38 = arith.truncf %37 : vector<128x256xf32> to vector<128x256xbf16>
    %c0_18 = arith.constant 0 : index
    %c0_19 = arith.constant 0 : index
    %39 = vector.load %arg6[%c0_18, %c0_19] : memref<256x32xbf16, #tpu.memory_space<vmem>>, vector<256x32xbf16>
    %cst_20 = arith.constant dense<0.000000e+00> : vector<128x32xf32>
    %40 = tpu.matmul %38, %39, %cst_20 {dimension_numbers = #tpu.dot_dimension_numbers<[1], [0], [0], [1], [0, 0, 1, 1], [], []>} : vector<128x256xbf16>, vector<256x32xbf16>, vector<128x32xf32> -> vector<128x32xf32>
    %c0_21 = arith.constant 0 : index
    %c0_22 = arith.constant 0 : index
    %41 = vector.load %arg7[%c0_21, %c0_22] : memref<1x32xf32, #tpu.memory_space<vmem>>, vector<1x32xf32>
    %42 = vector.broadcast %41 : vector<1x32xf32> to vector<128x32xf32>
    %43 = arith.addf %40, %42 : vector<128x32xf32>
    %c0_23 = arith.constant 0 : index
    %c0_24 = arith.constant 0 : index
    %44 = vector.load %arg8[%c0_23, %c0_24] : memref<128x32xf32, #tpu.memory_space<vmem>>, vector<128x32xf32>
    tpu.vector_store %arg8[%c0_23, %c0_24], %43 {strides = array<i32>} : memref<128x32xf32, #tpu.memory_space<vmem>>, vector<128x32xf32>,
    return
  }
  func.func @transform_0(%arg0: i32) -> (i32, i32) {
    %c0_i32 = arith.constant 0 : i32
    %c0_i32_0 = arith.constant 0 : i32
    return %arg0, %c0_i32 : i32, i32
  }
  func.func @transform_1(%arg0: i32) -> (i32, i32) {
    %c0_i32 = arith.constant 0 : i32
    %c0_i32_0 = arith.constant 0 : i32
    %c0_i32_1 = arith.constant 0 : i32
    return %c0_i32, %c0_i32_0 : i32, i32
  }
  func.func @transform_2(%arg0: i32) -> (i32, i32) {
    %c0_i32 = arith.constant 0 : i32
    %c0_i32_0 = arith.constant 0 : i32
    %c0_i32_1 = arith.constant 0 : i32
    return %c0_i32, %c0_i32_0 : i32, i32
  }
  func.func @transform_3(%arg0: i32) -> (i32, i32) {
    %c0_i32 = arith.constant 0 : i32
    %c0_i32_0 = arith.constant 0 : i32
    %c0_i32_1 = arith.constant 0 : i32
    return %c0_i32, %c0_i32_0 : i32, i32
  }
  func.func @transform_4(%arg0: i32) -> (i32, i32) {
    %c0_i32 = arith.constant 0 : i32
    %c0_i32_0 = arith.constant 0 : i32
    %c0_i32_1 = arith.constant 0 : i32
    return %c0_i32, %c0_i32_0 : i32, i32
  }
  func.func @transform_5(%arg0: i32) -> (i32, i32) {
    %c0_i32 = arith.constant 0 : i32
    %c0_i32_0 = arith.constant 0 : i32
    %c0_i32_1 = arith.constant 0 : i32
    return %c0_i32, %c0_i32_0 : i32, i32
  }
  func.func @transform_6(%arg0: i32) -> (i32, i32) {
    %c0_i32 = arith.constant 0 : i32
    %c0_i32_0 = arith.constant 0 : i32
    %c0_i32_1 = arith.constant 0 : i32
    return %c0_i32, %c0_i32_0 : i32, i32
  }
  func.func @transform_7(%arg0: i32) -> (i32, i32) {
    %c0_i32 = arith.constant 0 : i32
    %c0_i32_0 = arith.constant 0 : i32
    return %arg0, %c0_i32 : i32, i32
  }
}

</mosaic_0001>

<llo_original>
// kernel: _forward_impl.1
$region0: #{_forward_impl.1}
  #allocation0 [shape = 'u32[]', space=smem, size = 0x4, offset = 0x4, fixed_abs, tag = 'smem constant byte address 0x4 - core index']
  #allocation1 [shape = 'u32[144,128]{1,0:T(1,128)}', space=vmem, size = 0x12000, scoped, tag = 'internal scratch']
  %s0 = inlined_call_operand.vmem [shape: bf16[256,33], index: 0, kind: input, shape index: {}]
  %s1 = inlined_call_operand.vmem [shape: bf16[33,256], index: 1, kind: input, shape index: {}]
  %s2 = inlined_call_operand.vmem [shape: f32[1,256], index: 2, kind: input, shape index: {}, may-alias: {2,4}]
  %s3 = inlined_call_operand.vmem [shape: bf16[256,256], index: 3, kind: input, shape index: {}]
  %s4 = inlined_call_operand.vmem [shape: f32[1,256], index: 4, kind: input, shape index: {}, may-alias: {2,4}]
  %s5 = inlined_call_operand.vmem [shape: bf16[256,32], index: 5, kind: input, shape index: {}]
  %s6 = inlined_call_operand.vmem [shape: f32[1,32], index: 6, kind: input, shape index: {}]
  %s7 = inlined_call_operand.vmem [shape: f32[256,32], index: 7, kind: output, shape index: {}]
  %s8 = sld [smem:[#allocation0]]
  $region61: #{_forward_impl.1} parent=0
    _
  %s10 = ssub.s32 1, %s8
  %s11 = scalar_select 0, %s10, %s8
  loop: start=0, step=1, limit=4
  $region2: #{_forward_impl.1} parent=0 // loop_pre_header
    _
  $region3: #{_forward_impl.1} parent=0 // loop_header
    %s13 = sphi 0, %s17
    %p14 = scmp.ge.s32.totalorder %s13, 4
    %s23 = sphi 0, %s25
    %s26 = sphi 0, %s23
    %s27 = sphi 0, %s26
    %s43 = sphi 0, %s27
    %s47 = sphi 0, %s47
    %s49 = sphi 0, %s47
    %s50 = sphi 0, %s49
    %s64 = sphi 0, %s50
    %s68 = sphi 0, %s68
    %s70 = sphi 0, %s68
    %s71 = sphi 0, %s70
    %s85 = sphi 0, %s71
    %s89 = sphi 0, %s89
    %s91 = sphi 0, %s89
    %s92 = sphi 0, %s91
    %s106 = sphi 0, %s92
    %s110 = sphi 0, %s110
    %s112 = sphi 0, %s110
    %s113 = sphi 0, %s112
    %s127 = sphi 0, %s113
    %s131 = sphi 0, %s131
    %s133 = sphi 0, %s131
    %s134 = sphi 0, %s133
    %s148 = sphi 0, %s134
    %s152 = sphi 0, %s152
    %s154 = sphi 0, %s152
    %s155 = sphi 0, %s154
    %s169 = sphi 0, %s155
    %s175 = sphi 0, %s177
    %s178 = sphi 0, %s175
    %s179 = sphi 0, %s178
    %s195 = sphi 0, %s179
  $region4: #{_forward_impl.1} parent=0 // loop_header_branch
    %16 = sbr.rel (%p14) target = $region8
  $region5: #{_forward_impl.1} parent=0 // loop_body
    %s18 = ssub.s32 %s13, 1
    %s19 = ssub.s32 %s13, 2
    %s20 = sadd.s32 %s13, 1
    %s21 = ssub.s32 %s13, %s20
    %p22 = scmp.eq.s32.totalorder %s21, 0
    %s24 = sadd.s32 %s23, 1
    %s25 = scalar_select %p22, %s23, %s24
    %p28 = pneg %p22
    %p29 = scmp.eq.s32.totalorder %s13, 1
    %p30 = por %p28, %p29
    %p31 = scmp.ne.s32.totalorder %s23, %s26
    %p32 = scmp.eq.s32.totalorder %s13, 0
    %p33 = por %p31, %p32
    %p34 = scmp.ne.s32.totalorder %s23, %s26
    %p35 = scmp.eq.s32.totalorder %s18, 1
    %p36 = por %p34, %p35
    %p37 = scmp.ne.s32.totalorder %s26, %s27
    %p38 = scmp.eq.s32.totalorder %s18, 0
    %p39 = por %p37, %p38
    %p40 = scmp.ne.s32.totalorder %s26, %s27
    %p41 = scmp.eq.s32.totalorder %s19, 1
    %p42 = por %p40, %p41
    %p44 = scmp.ne.s32.totalorder %s27, %s43
    %p45 = scmp.eq.s32.totalorder %s19, 0
    %p46 = por %p44, %p45
    %s48 = sadd.s32 %s47, 1
    %p51 = scmp.eq.s32.totalorder %s13, 1
    %p52 = scmp.ne.s32.totalorder %s47, %s49
    %p53 = scmp.eq.s32.totalorder %s13, 0
    %p54 = por %p52, %p53
    %p55 = scmp.ne.s32.totalorder %s47, %s49
    %p56 = scmp.eq.s32.totalorder %s18, 1
    %p57 = por %p55, %p56
    %p58 = scmp.ne.s32.totalorder %s49, %s50
    %p59 = scmp.eq.s32.totalorder %s18, 0
    %p60 = por %p58, %p59
    %p61 = scmp.ne.s32.totalorder %s49, %s50
    %p62 = scmp.eq.s32.totalorder %s19, 1
    %p63 = por %p61, %p62
    %p65 = scmp.ne.s32.totalorder %s50, %s64
    %p66 = scmp.eq.s32.totalorder %s19, 0
    %p67 = por %p65, %p66
    %s69 = sadd.s32 %s68, 1
    %p72 = scmp.eq.s32.totalorder %s13, 1
    %p73 = scmp.ne.s32.totalorder %s68, %s70
    %p74 = scmp.eq.s32.totalorder %s13, 0
    %p75 = por %p73, %p74
    %p76 = scmp.ne.s32.totalorder %s68, %s70
    %p77 = scmp.eq.s32.totalorder %s18, 1
    %p78 = por %p76, %p77
    %p79 = scmp.ne.s32.totalorder %s70, %s71
    %p80 = scmp.eq.s32.totalorder %s18, 0
    %p81 = por %p79, %p80
    %p82 = scmp.ne.s32.totalorder %s70, %s71
    %p83 = scmp.eq.s32.totalorder %s19, 1
    %p84 = por %p82, %p83
    %p86 = scmp.ne.s32.totalorder %s71, %s85
    %p87 = scmp.eq.s32.totalorder %s19, 0
    %p88 = por %p86, %p87
    %s90 = sadd.s32 %s89, 1
    %p93 = scmp.eq.s32.totalorder %s13, 1
    %p94 = scmp.ne.s32.totalorder %s89, %s91
    %p95 = scmp.eq.s32.totalorder %s13, 0
    %p96 = por %p94, %p95
    %p97 = scmp.ne.s32.totalorder %s89, %s91
    %p98 = scmp.eq.s32.totalorder %s18, 1
    %p99 = por %p97, %p98
    %p100 = scmp.ne.s32.totalorder %s91, %s92
    %p101 = scmp.eq.s32.totalorder %s18, 0
    %p102 = por %p100, %p101
    %p103 = scmp.ne.s32.totalorder %s91, %s92
    %p104 = scmp.eq.s32.totalorder %s19, 1
    %p105 = por %p103, %p104
    %p107 = scmp.ne.s32.totalorder %s92, %s106
    %p108 = scmp.eq.s32.totalorder %s19, 0
    %p109 = por %p107, %p108
    %s111 = sadd.s32 %s110, 1
    %p114 = scmp.eq.s32.totalorder %s13, 1
    %p115 = scmp.ne.s32.totalorder %s110, %s112
    %p116 = scmp.eq.s32.totalorder %s13, 0
    %p117 = por %p115, %p116
    %p118 = scmp.ne.s32.totalorder %s110, %s112
    %p119 = scmp.eq.s32.totalorder %s18, 1
    %p120 = por %p118, %p119
    %p121 = scmp.ne.s32.totalorder %s112, %s113
    %p122 = scmp.eq.s32.totalorder %s18, 0
    %p123 = por %p121, %p122
    %p124 = scmp.ne.s32.totalorder %s112, %s113
    %p125 = scmp.eq.s32.totalorder %s19, 1
    %p126 = por %p124, %p125
    %p128 = scmp.ne.s32.totalorder %s113, %s127
    %p129 = scmp.eq.s32.totalorder %s19, 0
    %p130 = por %p128, %p129
    %s132 = sadd.s32 %s131, 1
    %p135 = scmp.eq.s32.totalorder %s13, 1
    %p136 = scmp.ne.s32.totalorder %s131, %s133
    %p137 = scmp.eq.s32.totalorder %s13, 0
    %p138 = por %p136, %p137
    %p139 = scmp.ne.s32.totalorder %s131, %s133
    %p140 = scmp.eq.s32.totalorder %s18, 1
    %p141 = por %p139, %p140
    %p142 = scmp.ne.s32.totalorder %s133, %s134
    %p143 = scmp.eq.s32.totalorder %s18, 0
    %p144 = por %p142, %p143
    %p145 = scmp.ne.s32.totalorder %s133, %s134
    %p146 = scmp.eq.s32.totalorder %s19, 1
    %p147 = por %p145, %p146
    %p149 = scmp.ne.s32.totalorder %s134, %s148
    %p150 = scmp.eq.s32.totalorder %s19, 0
    %p151 = por %p149, %p150
    %s153 = sadd.s32 %s152, 1
    %p156 = scmp.eq.s32.totalorder %s13, 1
    %p157 = scmp.ne.s32.totalorder %s152, %s154
    %p158 = scmp.eq.s32.totalorder %s13, 0
    %p159 = por %p157, %p158
    %p160 = scmp.ne.s32.totalorder %s152, %s154
    %p161 = scmp.eq.s32.totalorder %s18, 1
    %p162 = por %p160, %p161
    %p163 = scmp.ne.s32.totalorder %s154, %s155
    %p164 = scmp.eq.s32.totalorder %s18, 0
    %p165 = por %p163, %p164
    %p166 = scmp.ne.s32.totalorder %s154, %s155
    %p167 = scmp.eq.s32.totalorder %s19, 1
    %p168 = por %p166, %p167
    %p170 = scmp.ne.s32.totalorder %s155, %s169
    %p171 = scmp.eq.s32.totalorder %s19, 0
    %p172 = por %p170, %p171
    %s173 = ssub.s32 %s13, %s20
    %p174 = scmp.eq.s32.totalorder %s173, 0
    %s176 = sadd.s32 %s175, 1
    %s177 = scalar_select %p174, %s175, %s176
    %p180 = pneg %p174
    %p181 = scmp.eq.s32.totalorder %s13, 1
    %p182 = por %p180, %p181
    %p183 = scmp.ne.s32.totalorder %s175, %s178
    %p184 = scmp.eq.s32.totalorder %s13, 0
    %p185 = por %p183, %p184
    %p186 = scmp.ne.s32.totalorder %s175, %s178
    %p187 = scmp.eq.s32.totalorder %s18, 1
    %p188 = por %p186, %p187
    %p189 = scmp.ne.s32.totalorder %s178, %s179
    %p190 = scmp.eq.s32.totalorder %s18, 0
    %p191 = por %p189, %p190
    %p192 = scmp.ne.s32.totalorder %s178, %s179
    %p193 = scmp.eq.s32.totalorder %s19, 1
    %p194 = por %p192, %p193
    %p196 = scmp.ne.s32.totalorder %s179, %s195
    %p197 = scmp.eq.s32.totalorder %s19, 0
    %p198 = por %p196, %p197
    %p199 = scmp.le.s32.totalorder 1, %s13
    %p200 = scmp.lt.s32.totalorder %s13, 3
    %p201 = pnand %p199, %p200
    %p202 = pneg %p201
    // Predicated region
    $region9: #{_forward_impl.1} parent=5 // pred_check
      _
    $region10: #{_forward_impl.1} parent=5 // pred_check_branch
      %204 = sbr.rel (%p201) target = $region12
    $region11: #{_forward_impl.1} parent=5 // pred_region
      %s205 = ssub.s32 %s13, 1
      // Predicated region
      $region13: #{_forward_impl.1} parent=11 // pred_check
        %p206 = pneg %p60
      $region14: #{_forward_impl.1} parent=11 // pred_check_branch
        %208 = sbr.rel (%p206) target = $region16
      $region15: #{_forward_impl.1} parent=11 // pred_region
        _
      $region16: #{_forward_impl.1} parent=11 // pred_fallthru
        _
      // Predicated region
      $region17: #{_forward_impl.1} parent=11 // pred_check
        %p209 = pneg %p81
      $region18: #{_forward_impl.1} parent=11 // pred_check_branch
        %211 = sbr.rel (%p209) target = $region20
      $region19: #{_forward_impl.1} parent=11 // pred_region
        _
      $region20: #{_forward_impl.1} parent=11 // pred_fallthru
        _
      // Predicated region
      $region21: #{_forward_impl.1} parent=11 // pred_check
        %p212 = pneg %p102
      $region22: #{_forward_impl.1} parent=11 // pred_check_branch
        %214 = sbr.rel (%p212) target = $region24
      $region23: #{_forward_impl.1} parent=11 // pred_region
        _
      $region24: #{_forward_impl.1} parent=11 // pred_fallthru
        _
      // Predicated region
      $region25: #{_forward_impl.1} parent=11 // pred_check
        %p215 = pneg %p123
      $region26: #{_forward_impl.1} parent=11 // pred_check_branch
        %217 = sbr.rel (%p215) target = $region28
      $region27: #{_forward_impl.1} parent=11 // pred_region
        _
      $region28: #{_forward_impl.1} parent=11 // pred_fallthru
        _
      // Predicated region
      $region29: #{_forward_impl.1} parent=11 // pred_check
        %p218 = pneg %p144
      $region30: #{_forward_impl.1} parent=11 // pred_check_branch
        %220 = sbr.rel (%p218) target = $region32
      $region31: #{_forward_impl.1} parent=11 // pred_region
        _
      $region32: #{_forward_impl.1} parent=11 // pred_fallthru
        _
      // Predicated region
      $region33: #{_forward_impl.1} parent=11 // pred_check
        %p221 = pneg %p165
      $region34: #{_forward_impl.1} parent=11 // pred_check_branch
        %223 = sbr.rel (%p221) target = $region36
      $region35: #{_forward_impl.1} parent=11 // pred_region
        _
      $region36: #{_forward_impl.1} parent=11 // pred_fallthru
        _
    $region12: #{_forward_impl.1} parent=5 // pred_fallthru
      _
    %p224 = scmp.lt.s32.totalorder %s13, 2
    // Predicated region
    $region37: #{_forward_impl.1} parent=5 // pred_check
      %p225 = pneg %p224
    $region38: #{_forward_impl.1} parent=5 // pred_check_branch
      %227 = sbr.rel (%p225) target = $region40
    $region39: #{_forward_impl.1} parent=5 // pred_region
      // Predicated region
      $region41: #{_forward_impl.1} parent=39 // pred_check
        %p228 = pneg %p33
      $region42: #{_forward_impl.1} parent=39 // pred_check_branch
        %230 = sbr.rel (%p228) target = $region44
      $region43: #{_forward_impl.1} parent=39 // pred_region
        %s231 = smul.u32 16, %s13
        %p232 = scmp.lt.s32.totalorder %s231, 31
        %s233 = scalar_select %p232, %s231, 31
        %s234 = smul.addr %s233, 4
        %s235 = scalar_lea.vmem %s0, %s234
        %s236 = smul.u32 16, %s13
      $region44: #{_forward_impl.1} parent=39 // pred_fallthru
        _
    $region40: #{_forward_impl.1} parent=5 // pred_fallthru
      _
    %p237 = scmp.le.s32.totalorder 1, %s13
    %p238 = scmp.lt.s32.totalorder %s13, 3
    %p239 = pnand %p237, %p238
    %p240 = pneg %p239
    // Predicated region
    $region45: #{_forward_impl.1} parent=5 // pred_check
      _
    $region46: #{_forward_impl.1} parent=5 // pred_check_branch
      %242 = sbr.rel (%p239) target = $region48
    $region47: #{_forward_impl.1} parent=5 // pred_region
      %s243 = ssub.s32 %s13, 1
      %s244 = smul.u32 16, %s18
      %p245 = scmp.lt.s32.totalorder %s244, 31
      %s246 = scalar_select %p245, %s244, 31
      %s247 = smul.addr %s246, 4
      %s248 = scalar_lea.vmem %s0, %s247
      %p249 = pneg %p39
      %p250 = pneg %p36
      %p251 = pneg %p60
      %p252 = pneg %p57
      %p253 = pneg %p81
      %p254 = pneg %p78
      %p255 = pneg %p102
      %p256 = pneg %p99
      %p257 = pneg %p123
      %p258 = pneg %p120
      %p259 = pneg %p144
      %p260 = pneg %p141
      %p261 = pneg %p165
      %p262 = pneg %p162
      %p263 = pneg %p191
      %p264 = pneg %p188
      %s265 = smul.u32 16, %s18
      %p266 = scmp.lt.s32.totalorder %s265, 31
      %s267 = scalar_select %p266, %s265, 31
      %s268 = smul.addr %s267, 8
      %s269 = scalar_lea.vmem %s7, %s268
      %s270 = smul.u32 16, %s18
      %p271 = scmp.lt.s32.totalorder %s270, 31
      %s272 = scalar_select %p271, %s270, 31
      %s273 = smul.addr %s272, 4
      %s274 = scalar_lea.vmem %s0, %s273
      %s275 = smul.u32 16, %s18
      %s276 = smul.u32 16, %s18
      %p277 = scmp.lt.s32.totalorder %s276, 31
      %s278 = scalar_select %p277, %s276, 31
      %s279 = smul.addr %s278, 8
      %s280 = scalar_lea.vmem %s7, %s279
      %s281 = smul.u32 16, %s18
      %v283 = vld [vmem:[%s274] sm:$0xf]
      %v284 = vld [vmem:[%s274 + $0x4] sm:$0xf]
      %v285 = vld [vmem:[%s274 + $0x8] sm:$0xf]
      %v286 = vld [vmem:[%s274 + $0xc] sm:$0xf]
      %v287 = vld [vmem:[%s274 + $0x10] sm:$0xf]
      %v288 = vld [vmem:[%s274 + $0x14] sm:$0xf]
      %v289 = vld [vmem:[%s274 + $0x18] sm:$0xf]
      %v290 = vld [vmem:[%s274 + $0x1c] sm:$0xf]
      %v291 = vld [vmem:[%s274 + $0x20] sm:$0xf]
      %v292 = vld [vmem:[%s274 + $0x24] sm:$0xf]
      %v293 = vld [vmem:[%s274 + $0x28] sm:$0xf]
      %v294 = vld [vmem:[%s274 + $0x2c] sm:$0xf]
      %v295 = vld [vmem:[%s274 + $0x30] sm:$0xf]
      %v296 = vld [vmem:[%s274 + $0x34] sm:$0xf]
      %v297 = vld [vmem:[%s274 + $0x38] sm:$0xf]
      %v298 = vld [vmem:[%s274 + $0x3c] sm:$0xf]
      %v299 = vld [vmem:[%s1] sm:$0xff]
      %v300 = vld [vmem:[%s1 + $0x8] sm:$0xff]
      %v301 = vld [vmem:[%s1 + $0x10] sm:$0xff]
      %v302 = vld [vmem:[%s1 + $0x18] sm:$0xff]
      %v303 = vld [vmem:[%s1 + $0x20] sm:$0x11]
      %v304 = vld [vmem:[%s2] sm:$0x3]
      %v306 = vlaneseq
      %v307 = vshrl.u32 %v306, 7
      %v308 = vsub.s32 0, %v307
      %v309 = vrot.slane %v304, %v308
      %v310 = vlaneseq
      %v311 = vshrl.u32 %v310, 7
      %v312 = vsub.s32 1, %v311
      %v313 = vrot.slane %v304, %v312
      %v332 = vunpack.c.l.b16 %v283
      %v333 = vunpack.c.l.b16 %v284
      %v334 = vunpack.c.l.b16 %v285
      %v335 = vunpack.c.l.b16 %v286
      %v336 = vunpack.c.l.b16 %v287
      %v337 = vunpack.c.l.b16 %v288
      %v338 = vunpack.c.l.b16 %v289
      %v339 = vunpack.c.l.b16 %v290
      %v340 = vunpack.c.l.b16 %v291
      %v341 = vunpack.c.l.b16 %v292
      %v342 = vunpack.c.l.b16 %v293
      %v343 = vunpack.c.l.b16 %v294
      %v344 = vunpack.c.l.b16 %v295
      %v345 = vunpack.c.l.b16 %v296
      %v346 = vunpack.c.l.b16 %v297
      %v347 = vunpack.c.l.b16 %v298
      %v348 = vpack.c.b16 %v333, %v332
      %v349 = vpack.c.b16 %v335, %v334
      %v350 = vpack.c.b16 %v337, %v336
      %v351 = vpack.c.b16 %v339, %v338
      %v352 = vpack.c.b16 %v341, %v340
      %v353 = vpack.c.b16 %v343, %v342
      %v354 = vpack.c.b16 %v345, %v344
      %v355 = vpack.c.b16 %v347, %v346
      %v361 = vunpack.c.l.b16 %v299
      %v362 = vunpack.c.h.b16 %v299
      %v363 = vunpack.c.l.b16 %v300
      %v364 = vunpack.c.h.b16 %v300
      %v365 = vunpack.c.l.b16 %v301
      %v366 = vunpack.c.h.b16 %v301
      %v367 = vunpack.c.l.b16 %v302
      %v368 = vunpack.c.h.b16 %v302
      %v369 = vunpack.c.l.b16 %v303
      %v370 = vunpack.c.h.b16 %v303
      %v371 = vpack.c.b16 %v363, %v361
      %v372 = vpack.c.b16 %v364, %v362
      %v373 = vpack.c.b16 %v367, %v365
      %v374 = vpack.c.b16 %v368, %v366
      %v375 = vpack.c.b16 %v369, %v369
      %v376 = vpack.c.b16 %v370, %v370
      %vm381 = vcmask 269312
      %v383 = vsel %vm381, %v348, 0
      %v386 = vsel %vm381, %v349, 0
      %v389 = vsel %vm381, %v350, 0
      %v392 = vsel %vm381, %v351, 0
      %v395 = vsel %vm381, %v352, 0
      %v398 = vsel %vm381, %v353, 0
      %v401 = vsel %vm381, %v354, 0
      %v404 = vsel %vm381, %v355, 0
      %vm406 = vcmask 1040384
      %v407 = vsel 0, 4294967295, 65535
      %v408 = vsel %vm406, %v407, 0
      %v410 = vand.u32 %v375, %v408
      %v413 = vand.u32 %v376, %v408
      %415 = vmatprep.subr.bf16.mxu0 %v372
      %416 = vmatpush1.bf16.msra.mxu0 %v371
      %417 = vmatprep.subr.bf16.mxu0 %v374
      %418 = vmatpush1.bf16.msra.mxu0 %v373
      %419 = vmatprep.subr.bf16.mxu0 %v413
      %420 = vmatpush1.bf16.msra.mxu0 %v410
      %421 = vmatprep.subr.bf16.mxu0 0
      %422 = vmatpush1.bf16.msra.mxu0 0
      %423 = vmatprep.subr.bf16.mxu0 0
      %424 = vmatpush1.bf16.msra.mxu0 0
      %425 = vmatprep.subr.bf16.mxu0 0
      %426 = vmatpush1.bf16.msra.mxu0 0
      %427 = vmatprep.subr.bf16.mxu0 0
      %428 = vmatpush1.bf16.msra.mxu0 0
      %429 = vmatprep.subr.bf16.mxu0 0
      %430 = vmatpush1.bf16.msra.mxu0 0
      %431 = vmatprep.subr.bf16.mxu0 0
      %432 = vmatpush1.bf16.msra.mxu0 0
      %433 = vmatprep.subr.bf16.mxu0 0
      %434 = vmatpush1.bf16.msra.mxu0 0
      %435 = vmatprep.subr.bf16.mxu0 0
      %436 = vmatpush1.bf16.msra.mxu0 0
      %437 = vmatprep.subr.bf16.mxu0 0
      %438 = vmatpush1.bf16.msra.mxu0 0
      %439 = vmatprep.subr.bf16.mxu0 0
      %440 = vmatpush1.bf16.msra.mxu0 0
      %441 = vmatprep.subr.bf16.mxu0 0
      %442 = vmatpush1.bf16.msra.mxu0 0
      %443 = vmatprep.subr.bf16.mxu0 0
      %444 = vmatpush1.bf16.msra.mxu0 0
      %445 = vmatprep.subr.bf16.mxu0 0
      %446 = vmatpush1.bf16.msra.mxu0 0
      %447 = vmatprep.mubr.bf16.mxu0 0
      %448 = vmatmul.mubr.bf16.gmra.mrb[0].mxu0 %v383
      %v449 = vpop.f32.mrb[0].mxu0
      %v450 = vadd.f32 %v309, %v449
      %v451 = vpop.f32.mrb[0].mxu0
      %v452 = vadd.f32 %v313, %v451
      %v453 = vpop.f32.mrb[0].mxu0
      %v454 = vadd.f32 %v309, %v453
      %v455 = vpop.f32.mrb[0].mxu0
      %v456 = vadd.f32 %v313, %v455
      %457 = vmatprep.mubr.bf16.mxu0 0
      %458 = vmatmul.mubr.bf16.gmra.mrb[0].mxu0 %v386
      %v459 = vpop.f32.mrb[0].mxu0
      %v460 = vadd.f32 %v309, %v459
      %v461 = vpop.f32.mrb[0].mxu0
      %v462 = vadd.f32 %v313, %v461
      %v463 = vpop.f32.mrb[0].mxu0
      %v464 = vadd.f32 %v309, %v463
      %v465 = vpop.f32.mrb[0].mxu0
      %v466 = vadd.f32 %v313, %v465
      %467 = vmatprep.mubr.bf16.mxu0 0
      %468 = vmatmul.mubr.bf16.gmra.mrb[0].mxu0 %v389
      %v469 = vpop.f32.mrb[0].mxu0
      %v470 = vadd.f32 %v309, %v469
      %v471 = vpop.f32.mrb[0].mxu0
      %v472 = vadd.f32 %v313, %v471
      %v473 = vpop.f32.mrb[0].mxu0
      %v474 = vadd.f32 %v309, %v473
      %v475 = vpop.f32.mrb[0].mxu0
      %v476 = vadd.f32 %v313, %v475
      %477 = vmatprep.mubr.bf16.mxu0 0
      %478 = vmatmul.mubr.bf16.gmra.mrb[0].mxu0 %v392
      %v479 = vpop.f32.mrb[0].mxu0
      %v480 = vadd.f32 %v309, %v479
      %v481 = vpop.f32.mrb[0].mxu0
      %v482 = vadd.f32 %v313, %v481
      %v483 = vpop.f32.mrb[0].mxu0
      %v484 = vadd.f32 %v309, %v483
      %v485 = vpop.f32.mrb[0].mxu0
      %v486 = vadd.f32 %v313, %v485
      %487 = vmatprep.mubr.bf16.mxu0 0
      %488 = vmatmul.mubr.bf16.gmra.mrb[0].mxu0 %v395
      %v489 = vpop.f32.mrb[0].mxu0
      %v490 = vadd.f32 %v309, %v489
      %v491 = vpop.f32.mrb[0].mxu0
      %v492 = vadd.f32 %v313, %v491
      %v493 = vpop.f32.mrb[0].mxu0
      %v494 = vadd.f32 %v309, %v493
      %v495 = vpop.f32.mrb[0].mxu0
      %v496 = vadd.f32 %v313, %v495
      %497 = vmatprep.mubr.bf16.mxu0 0
      %498 = vmatmul.mubr.bf16.gmra.mrb[0].mxu0 %v398
      %v499 = vpop.f32.mrb[0].mxu0
      %v500 = vadd.f32 %v309, %v499
      %v501 = vpop.f32.mrb[0].mxu0
      %v502 = vadd.f32 %v313, %v501
      %v503 = vpop.f32.mrb[0].mxu0
      %v504 = vadd.f32 %v309, %v503
      %v505 = vpop.f32.mrb[0].mxu0
      %v506 = vadd.f32 %v313, %v505
      %507 = vmatprep.mubr.bf16.mxu0 0
      %508 = vmatmul.mubr.bf16.gmra.mrb[0].mxu0 %v401
      %v509 = vpop.f32.mrb[0].mxu0
      %v510 = vadd.f32 %v309, %v509
      %v511 = vpop.f32.mrb[0].mxu0
      %v512 = vadd.f32 %v313, %v511
      %v513 = vpop.f32.mrb[0].mxu0
      %v514 = vadd.f32 %v309, %v513
      %v515 = vpop.f32.mrb[0].mxu0
      %v516 = vadd.f32 %v313, %v515
      %517 = vmatprep.mubr.bf16.mxu0 0
      %518 = vmatmul.mubr.bf16.gmra.mrb[0].mxu0 %v404
      %v519 = vpop.f32.mrb[0].mxu0
      %v520 = vadd.f32 %v309, %v519
      %v521 = vpop.f32.mrb[0].mxu0
      %v522 = vadd.f32 %v313, %v521
      %v523 = vpop.f32.mrb[0].mxu0
      %v524 = vadd.f32 %v309, %v523
      %v525 = vpop.f32.mrb[0].mxu0
      %v526 = vadd.f32 %v313, %v525
      %527 = vdwg.mxu0
      %v528 = vmul.f32 %v450, %v450
      %v529 = vmul.f32 %v452, %v452
      %v530 = vmul.f32 %v454, %v454
      %v531 = vmul.f32 %v456, %v456
      %v532 = vmul.f32 %v460, %v460
      %v533 = vmul.f32 %v462, %v462
      %v534 = vmul.f32 %v464, %v464
      %v535 = vmul.f32 %v466, %v466
      %v536 = vmul.f32 %v470, %v470
      %v537 = vmul.f32 %v472, %v472
      %v538 = vmul.f32 %v474, %v474
      %v539 = vmul.f32 %v476, %v476
      %v540 = vmul.f32 %v480, %v480
      %v541 = vmul.f32 %v482, %v482
      %v542 = vmul.f32 %v484, %v484
      %v543 = vmul.f32 %v486, %v486
      %v544 = vmul.f32 %v490, %v490
      %v545 = vmul.f32 %v492, %v492
      %v546 = vmul.f32 %v494, %v494
      %v547 = vmul.f32 %v496, %v496
      %v548 = vmul.f32 %v500, %v500
      %v549 = vmul.f32 %v502, %v502
      %v550 = vmul.f32 %v504, %v504
      %v551 = vmul.f32 %v506, %v506
      %v552 = vmul.f32 %v510, %v510
      %v553 = vmul.f32 %v512, %v512
      %v554 = vmul.f32 %v514, %v514
      %v555 = vmul.f32 %v516, %v516
      %v556 = vmul.f32 %v520, %v520
      %v557 = vmul.f32 %v522, %v522
      %v558 = vmul.f32 %v524, %v524
      %v559 = vmul.f32 %v526, %v526
      %v560 = vmul.f32 %v450, %v528
      %v561 = vmul.f32 %v452, %v529
      %v562 = vmul.f32 %v454, %v530
      %v563 = vmul.f32 %v456, %v531
      %v564 = vmul.f32 %v460, %v532
      %v565 = vmul.f32 %v462, %v533
      %v566 = vmul.f32 %v464, %v534
      %v567 = vmul.f32 %v466, %v535
      %v568 = vmul.f32 %v470, %v536
      %v569 = vmul.f32 %v472, %v537
      %v570 = vmul.f32 %v474, %v538
      %v571 = vmul.f32 %v476, %v539
      %v572 = vmul.f32 %v480, %v540
      %v573 = vmul.f32 %v482, %v541
      %v574 = vmul.f32 %v484, %v542
      %v575 = vmul.f32 %v486, %v543
      %v576 = vmul.f32 %v490, %v544
      %v577 = vmul.f32 %v492, %v545
      %v578 = vmul.f32 %v494, %v546
      %v579 = vmul.f32 %v496, %v547
      %v580 = vmul.f32 %v500, %v548
      %v581 = vmul.f32 %v502, %v549
      %v582 = vmul.f32 %v504, %v550
      %v583 = vmul.f32 %v506, %v551
      %v584 = vmul.f32 %v510, %v552
      %v585 = vmul.f32 %v512, %v553
      %v586 = vmul.f32 %v514, %v554
      %v587 = vmul.f32 %v516, %v555
      %v588 = vmul.f32 %v520, %v556
      %v589 = vmul.f32 %v522, %v557
      %v590 = vmul.f32 %v524, %v558
      %v591 = vmul.f32 %v526, %v559
      %v592 = vmul.f32 %v560, 0.044715
      %v593 = vmul.f32 %v561, 0.044715
      %v594 = vmul.f32 %v562, 0.044715
      %v595 = vmul.f32 %v563, 0.044715
      %v596 = vmul.f32 %v564, 0.044715
      %v597 = vmul.f32 %v565, 0.044715
      %v598 = vmul.f32 %v566, 0.044715
      %v599 = vmul.f32 %v567, 0.044715
      %v600 = vmul.f32 %v568, 0.044715
      %v601 = vmul.f32 %v569, 0.044715
      %v602 = vmul.f32 %v570, 0.044715
      %v603 = vmul.f32 %v571, 0.044715
      %v604 = vmul.f32 %v572, 0.044715
      %v605 = vmul.f32 %v573, 0.044715
      %v606 = vmul.f32 %v574, 0.044715
      %v607 = vmul.f32 %v575, 0.044715
      %v608 = vmul.f32 %v576, 0.044715
      %v609 = vmul.f32 %v577, 0.044715
      %v610 = vmul.f32 %v578, 0.044715
      %v611 = vmul.f32 %v579, 0.044715
      %v612 = vmul.f32 %v580, 0.044715
      %v613 = vmul.f32 %v581, 0.044715
      %v614 = vmul.f32 %v582, 0.044715
      %v615 = vmul.f32 %v583, 0.044715
      %v616 = vmul.f32 %v584, 0.044715
      %v617 = vmul.f32 %v585, 0.044715
      %v618 = vmul.f32 %v586, 0.044715
      %v619 = vmul.f32 %v587, 0.044715
      %v620 = vmul.f32 %v588, 0.044715
      %v621 = vmul.f32 %v589, 0.044715
      %v622 = vmul.f32 %v590, 0.044715
      %v623 = vmul.f32 %v591, 0.044715
      %v624 = vadd.f32 %v450, %v592
      %v625 = vadd.f32 %v452, %v593
      %v626 = vadd.f32 %v454, %v594
      %v627 = vadd.f32 %v456, %v595
      %v628 = vadd.f32 %v460, %v596
      %v629 = vadd.f32 %v462, %v597
      %v630 = vadd.f32 %v464, %v598
      %v631 = vadd.f32 %v466, %v599
      %v632 = vadd.f32 %v470, %v600
      %v633 = vadd.f32 %v472, %v601
      %v634 = vadd.f32 %v474, %v602
      %v635 = vadd.f32 %v476, %v603
      %v636 = vadd.f32 %v480, %v604
      %v637 = vadd.f32 %v482, %v605
      %v638 = vadd.f32 %v484, %v606
      %v639 = vadd.f32 %v486, %v607
      %v640 = vadd.f32 %v490, %v608
      %v641 = vadd.f32 %v492, %v609
      %v642 = vadd.f32 %v494, %v610
      %v643 = vadd.f32 %v496, %v611
      %v644 = vadd.f32 %v500, %v612
      %v645 = vadd.f32 %v502, %v613
      %v646 = vadd.f32 %v504, %v614
      %v647 = vadd.f32 %v506, %v615
      %v648 = vadd.f32 %v510, %v616
      %v649 = vadd.f32 %v512, %v617
      %v650 = vadd.f32 %v514, %v618
      %v651 = vadd.f32 %v516, %v619
      %v652 = vadd.f32 %v520, %v620
      %v653 = vadd.f32 %v522, %v621
      %v654 = vadd.f32 %v524, %v622
      %v655 = vadd.f32 %v526, %v623
      %v656 = vmul.f32 %v624, 0.7978846
      %v657 = vmul.f32 %v625, 0.7978846
      %v658 = vmul.f32 %v626, 0.7978846
      %v659 = vmul.f32 %v627, 0.7978846
      %v660 = vmul.f32 %v628, 0.7978846
      %v661 = vmul.f32 %v629, 0.7978846
      %v662 = vmul.f32 %v630, 0.7978846
      %v663 = vmul.f32 %v631, 0.7978846
      %v664 = vmul.f32 %v632, 0.7978846
      %v665 = vmul.f32 %v633, 0.7978846
      %v666 = vmul.f32 %v634, 0.7978846
      %v667 = vmul.f32 %v635, 0.7978846
      %v668 = vmul.f32 %v636, 0.7978846
      %v669 = vmul.f32 %v637, 0.7978846
      %v670 = vmul.f32 %v638, 0.7978846
      %v671 = vmul.f32 %v639, 0.7978846
      %v672 = vmul.f32 %v640, 0.7978846
      %v673 = vmul.f32 %v641, 0.7978846
      %v674 = vmul.f32 %v642, 0.7978846
      %v675 = vmul.f32 %v643, 0.7978846
      %v676 = vmul.f32 %v644, 0.7978846
      %v677 = vmul.f32 %v645, 0.7978846
      %v678 = vmul.f32 %v646, 0.7978846
      %v679 = vmul.f32 %v647, 0.7978846
      %v680 = vmul.f32 %v648, 0.7978846
      %v681 = vmul.f32 %v649, 0.7978846
      %v682 = vmul.f32 %v650, 0.7978846
      %v683 = vmul.f32 %v651, 0.7978846
      %v684 = vmul.f32 %v652, 0.7978846
      %v685 = vmul.f32 %v653, 0.7978846
      %v686 = vmul.f32 %v654, 0.7978846
      %v687 = vmul.f32 %v655, 0.7978846
      %v688 = vtanh.pop %v656
      %v689 = vtanh.pop %v657
      %v690 = vtanh.pop %v658
      %v691 = vtanh.pop %v659
      %v692 = vtanh.pop %v660
      %v693 = vtanh.pop %v661
      %v694 = vtanh.pop %v662
      %v695 = vtanh.pop %v663
      %v696 = vtanh.pop %v664
      %v697 = vtanh.pop %v665
      %v698 = vtanh.pop %v666
      %v699 = vtanh.pop %v667
      %v700 = vtanh.pop %v668
      %v701 = vtanh.pop %v669
      %v702 = vtanh.pop %v670
      %v703 = vtanh.pop %v671
      %v704 = vtanh.pop %v672
      %v705 = vtanh.pop %v673
      %v706 = vtanh.pop %v674
      %v707 = vtanh.pop %v675
      %v708 = vtanh.pop %v676
      %v709 = vtanh.pop %v677
      %v710 = vtanh.pop %v678
      %v711 = vtanh.pop %v679
      %v712 = vtanh.pop %v680
      %v713 = vtanh.pop %v681
      %v714 = vtanh.pop %v682
      %v715 = vtanh.pop %v683
      %v716 = vtanh.pop %v684
      %v717 = vtanh.pop %v685
      %v718 = vtanh.pop %v686
      %v719 = vtanh.pop %v687
      %v720 = vadd.f32 %v688, 1.0
      %v721 = vadd.f32 %v689, 1.0
      %v722 = vadd.f32 %v690, 1.0
      %v723 = vadd.f32 %v691, 1.0
      %v724 = vadd.f32 %v692, 1.0
      %v725 = vadd.f32 %v693, 1.0
      %v726 = vadd.f32 %v694, 1.0
      %v727 = vadd.f32 %v695, 1.0
      %v728 = vadd.f32 %v696, 1.0
      %v729 = vadd.f32 %v697, 1.0
      %v730 = vadd.f32 %v698, 1.0
      %v731 = vadd.f32 %v699, 1.0
      %v732 = vadd.f32 %v700, 1.0
      %v733 = vadd.f32 %v701, 1.0
      %v734 = vadd.f32 %v702, 1.0
      %v735 = vadd.f32 %v703, 1.0
      %v736 = vadd.f32 %v704, 1.0
      %v737 = vadd.f32 %v705, 1.0
      %v738 = vadd.f32 %v706, 1.0
      %v739 = vadd.f32 %v707, 1.0
      %v740 = vadd.f32 %v708, 1.0
      %v741 = vadd.f32 %v709, 1.0
      %v742 = vadd.f32 %v710, 1.0
      %v743 = vadd.f32 %v711, 1.0
      %v744 = vadd.f32 %v712, 1.0
      %v745 = vadd.f32 %v713, 1.0
      %v746 = vadd.f32 %v714, 1.0
      %v747 = vadd.f32 %v715, 1.0
      %v748 = vadd.f32 %v716, 1.0
      %v749 = vadd.f32 %v717, 1.0
      %v750 = vadd.f32 %v718, 1.0
      %v751 = vadd.f32 %v719, 1.0
      %v752 = vmul.f32 %v720, 0.5
      %v753 = vmul.f32 %v721, 0.5
      %v754 = vmul.f32 %v722, 0.5
      %v755 = vmul.f32 %v723, 0.5
      %v756 = vmul.f32 %v724, 0.5
      %v757 = vmul.f32 %v725, 0.5
      %v758 = vmul.f32 %v726, 0.5
      %v759 = vmul.f32 %v727, 0.5
      %v760 = vmul.f32 %v728, 0.5
      %v761 = vmul.f32 %v729, 0.5
      %v762 = vmul.f32 %v730, 0.5
      %v763 = vmul.f32 %v731, 0.5
      %v764 = vmul.f32 %v732, 0.5
      %v765 = vmul.f32 %v733, 0.5
      %v766 = vmul.f32 %v734, 0.5
      %v767 = vmul.f32 %v735, 0.5
      %v768 = vmul.f32 %v736, 0.5
      %v769 = vmul.f32 %v737, 0.5
      %v770 = vmul.f32 %v738, 0.5
      %v771 = vmul.f32 %v739, 0.5
      %v772 = vmul.f32 %v740, 0.5
      %v773 = vmul.f32 %v741, 0.5
      %v774 = vmul.f32 %v742, 0.5
      %v775 = vmul.f32 %v743, 0.5
      %v776 = vmul.f32 %v744, 0.5
      %v777 = vmul.f32 %v745, 0.5
      %v778 = vmul.f32 %v746, 0.5
      %v779 = vmul.f32 %v747, 0.5
      %v780 = vmul.f32 %v748, 0.5
      %v781 = vmul.f32 %v749, 0.5
      %v782 = vmul.f32 %v750, 0.5
      %v783 = vmul.f32 %v751, 0.5
      %v784 = vmul.f32 %v450, %v752
      %v785 = vmul.f32 %v452, %v753
      %v786 = vmul.f32 %v454, %v754
      %v787 = vmul.f32 %v456, %v755
      %v788 = vmul.f32 %v460, %v756
      %v789 = vmul.f32 %v462, %v757
      %v790 = vmul.f32 %v464, %v758
      %v791 = vmul.f32 %v466, %v759
      %v792 = vmul.f32 %v470, %v760
      %v793 = vmul.f32 %v472, %v761
      %v794 = vmul.f32 %v474, %v762
      %v795 = vmul.f32 %v476, %v763
      %v796 = vmul.f32 %v480, %v764
      %v797 = vmul.f32 %v482, %v765
      %v798 = vmul.f32 %v484, %v766
      %v799 = vmul.f32 %v486, %v767
      %v800 = vmul.f32 %v490, %v768
      %v801 = vmul.f32 %v492, %v769
      %v802 = vmul.f32 %v494, %v770
      %v803 = vmul.f32 %v496, %v771
      %v804 = vmul.f32 %v500, %v772
      %v805 = vmul.f32 %v502, %v773
      %v806 = vmul.f32 %v504, %v774
      %v807 = vmul.f32 %v506, %v775
      %v808 = vmul.f32 %v510, %v776
      %v809 = vmul.f32 %v512, %v777
      %v810 = vmul.f32 %v514, %v778
      %v811 = vmul.f32 %v516, %v779
      %v812 = vmul.f32 %v520, %v780
      %v813 = vmul.f32 %v522, %v781
      %v814 = vmul.f32 %v524, %v782
      %v815 = vmul.f32 %v526, %v783
      %v816 = vpack.c.bf16 %v786, %v784
      %v817 = vpack.c.bf16 %v787, %v785
      %v818 = vpack.c.bf16 %v790, %v788
      %v819 = vpack.c.bf16 %v791, %v789
      %v820 = vpack.c.bf16 %v794, %v792
      %v821 = vpack.c.bf16 %v795, %v793
      %v822 = vpack.c.bf16 %v798, %v796
      %v823 = vpack.c.bf16 %v799, %v797
      %v824 = vpack.c.bf16 %v802, %v800
      %v825 = vpack.c.bf16 %v803, %v801
      %v826 = vpack.c.bf16 %v806, %v804
      %v827 = vpack.c.bf16 %v807, %v805
      %v828 = vpack.c.bf16 %v810, %v808
      %v829 = vpack.c.bf16 %v811, %v809
      %v830 = vpack.c.bf16 %v814, %v812
      %v831 = vpack.c.bf16 %v815, %v813
      %v832 = vld [vmem:[%s3] sm:$0xff]
      %v833 = vld [vmem:[%s3 + $0x8] sm:$0xff]
      %v834 = vld [vmem:[%s3 + $0x10] sm:$0xff]
      %v835 = vld [vmem:[%s3 + $0x18] sm:$0xff]
      %v836 = vld [vmem:[%s3 + $0x20] sm:$0xff]
      %v837 = vld [vmem:[%s3 + $0x28] sm:$0xff]
      %v838 = vld [vmem:[%s3 + $0x30] sm:$0xff]
      %v839 = vld [vmem:[%s3 + $0x38] sm:$0xff]
      %v840 = vld [vmem:[%s3 + $0x40] sm:$0xff]
      %v841 = vld [vmem:[%s3 + $0x48] sm:$0xff]
      %v842 = vld [vmem:[%s3 + $0x50] sm:$0xff]
      %v843 = vld [vmem:[%s3 + $0x58] sm:$0xff]
      %v844 = vld [vmem:[%s3 + $0x60] sm:$0xff]
      %v845 = vld [vmem:[%s3 + $0x68] sm:$0xff]
      %v846 = vld [vmem:[%s3 + $0x70] sm:$0xff]
      %v847 = vld [vmem:[%s3 + $0x78] sm:$0xff]
      %v848 = vld [vmem:[%s3 + $0x80] sm:$0xff]
      %v849 = vld [vmem:[%s3 + $0x88] sm:$0xff]
      %v850 = vld [vmem:[%s3 + $0x90] sm:$0xff]
      %v851 = vld [vmem:[%s3 + $0x98] sm:$0xff]
      %v852 = vld [vmem:[%s3 + $0xa0] sm:$0xff]
      %v853 = vld [vmem:[%s3 + $0xa8] sm:$0xff]
      %v854 = vld [vmem:[%s3 + $0xb0] sm:$0xff]
      %v855 = vld [vmem:[%s3 + $0xb8] sm:$0xff]
      %v856 = vld [vmem:[%s3 + $0xc0] sm:$0xff]
      %v857 = vld [vmem:[%s3 + $0xc8] sm:$0xff]
      %v858 = vld [vmem:[%s3 + $0xd0] sm:$0xff]
      %v859 = vld [vmem:[%s3 + $0xd8] sm:$0xff]
      %v860 = vld [vmem:[%s3 + $0xe0] sm:$0xff]
      %v861 = vld [vmem:[%s3 + $0xe8] sm:$0xff]
      %v862 = vld [vmem:[%s3 + $0xf0] sm:$0xff]
      %v863 = vld [vmem:[%s3 + $0xf8] sm:$0xff]
      %v864 = vld [vmem:[%s4] sm:$0x3]
      %v866 = vlaneseq
      %v867 = vshrl.u32 %v866, 7
      %v868 = vsub.s32 0, %v867
      %v869 = vrot.slane %v864, %v868
      %v870 = vlaneseq
      %v871 = vshrl.u32 %v870, 7
      %v872 = vsub.s32 1, %v871
      %v873 = vrot.slane %v864, %v872
      %v908 = vunpack.c.l.b16 %v832
      %v909 = vunpack.c.h.b16 %v832
      %v910 = vunpack.c.l.b16 %v833
      %v911 = vunpack.c.h.b16 %v833
      %v912 = vunpack.c.l.b16 %v834
      %v913 = vunpack.c.h.b16 %v834
      %v914 = vunpack.c.l.b16 %v835
      %v915 = vunpack.c.h.b16 %v835
      %v916 = vunpack.c.l.b16 %v836
      %v917 = vunpack.c.h.b16 %v836
      %v918 = vunpack.c.l.b16 %v837
      %v919 = vunpack.c.h.b16 %v837
      %v920 = vunpack.c.l.b16 %v838
      %v921 = vunpack.c.h.b16 %v838
      %v922 = vunpack.c.l.b16 %v839
      %v923 = vunpack.c.h.b16 %v839
      %v924 = vunpack.c.l.b16 %v840
      %v925 = vunpack.c.h.b16 %v840
      %v926 = vunpack.c.l.b16 %v841
      %v927 = vunpack.c.h.b16 %v841
      %v928 = vunpack.c.l.b16 %v842
      %v929 = vunpack.c.h.b16 %v842
      %v930 = vunpack.c.l.b16 %v843
      %v931 = vunpack.c.h.b16 %v843
      %v932 = vunpack.c.l.b16 %v844
      %v933 = vunpack.c.h.b16 %v844
      %v934 = vunpack.c.l.b16 %v845
      %v935 = vunpack.c.h.b16 %v845
      %v936 = vunpack.c.l.b16 %v846
      %v937 = vunpack.c.h.b16 %v846
      %v938 = vunpack.c.l.b16 %v847
      %v939 = vunpack.c.h.b16 %v847
      %v940 = vunpack.c.l.b16 %v848
      %v941 = vunpack.c.h.b16 %v848
      %v942 = vunpack.c.l.b16 %v849
      %v943 = vunpack.c.h.b16 %v849
      %v944 = vunpack.c.l.b16 %v850
      %v945 = vunpack.c.h.b16 %v850
      %v946 = vunpack.c.l.b16 %v851
      %v947 = vunpack.c.h.b16 %v851
      %v948 = vunpack.c.l.b16 %v852
      %v949 = vunpack.c.h.b16 %v852
      %v950 = vunpack.c.l.b16 %v853
      %v951 = vunpack.c.h.b16 %v853
      %v952 = vunpack.c.l.b16 %v854
      %v953 = vunpack.c.h.b16 %v854
      %v954 = vunpack.c.l.b16 %v855
      %v955 = vunpack.c.h.b16 %v855
      %v956 = vunpack.c.l.b16 %v856
      %v957 = vunpack.c.h.b16 %v856
      %v958 = vunpack.c.l.b16 %v857
      %v959 = vunpack.c.h.b16 %v857
      %v960 = vunpack.c.l.b16 %v858
      %v961 = vunpack.c.h.b16 %v858
      %v962 = vunpack.c.l.b16 %v859
      %v963 = vunpack.c.h.b16 %v859
      %v964 = vunpack.c.l.b16 %v860
      %v965 = vunpack.c.h.b16 %v860
      %v966 = vunpack.c.l.b16 %v861
      %v967 = vunpack.c.h.b16 %v861
      %v968 = vunpack.c.l.b16 %v862
      %v969 = vunpack.c.h.b16 %v862
      %v970 = vunpack.c.l.b16 %v863
      %v971 = vunpack.c.h.b16 %v863
      %v972 = vpack.c.b16 %v910, %v908
      %v973 = vpack.c.b16 %v911, %v909
      %v974 = vpack.c.b16 %v914, %v912
      %v975 = vpack.c.b16 %v915, %v913
      %v976 = vpack.c.b16 %v918, %v916
      %v977 = vpack.c.b16 %v919, %v917
      %v978 = vpack.c.b16 %v922, %v920
      %v979 = vpack.c.b16 %v923, %v921
      %v980 = vpack.c.b16 %v926, %v924
      %v981 = vpack.c.b16 %v927, %v925
      %v982 = vpack.c.b16 %v930, %v928
      %v983 = vpack.c.b16 %v931, %v929
      %v984 = vpack.c.b16 %v934, %v932
      %v985 = vpack.c.b16 %v935, %v933
      %v986 = vpack.c.b16 %v938, %v936
      %v987 = vpack.c.b16 %v939, %v937
      %v988 = vpack.c.b16 %v942, %v940
      %v989 = vpack.c.b16 %v943, %v941
      %v990 = vpack.c.b16 %v946, %v944
      %v991 = vpack.c.b16 %v947, %v945
      %v992 = vpack.c.b16 %v950, %v948
      %v993 = vpack.c.b16 %v951, %v949
      %v994 = vpack.c.b16 %v954, %v952
      %v995 = vpack.c.b16 %v955, %v953
      %v996 = vpack.c.b16 %v958, %v956
      %v997 = vpack.c.b16 %v959, %v957
      %v998 = vpack.c.b16 %v962, %v960
      %v999 = vpack.c.b16 %v963, %v961
      %v1000 = vpack.c.b16 %v966, %v964
      %v1001 = vpack.c.b16 %v967, %v965
      %v1002 = vpack.c.b16 %v970, %v968
      %v1003 = vpack.c.b16 %v971, %v969
      %1036 = vmatprep.subr.bf16.mxu0 %v973
      %1037 = vmatpush1.bf16.msra.mxu0 %v972
      %1038 = vmatprep.subr.bf16.mxu0 %v975
      %1039 = vmatpush1.bf16.msra.mxu0 %v974
      %1040 = vmatprep.subr.bf16.mxu0 %v977
      %1041 = vmatpush1.bf16.msra.mxu0 %v976
      %1042 = vmatprep.subr.bf16.mxu0 %v979
      %1043 = vmatpush1.bf16.msra.mxu0 %v978
      %1044 = vmatprep.subr.bf16.mxu0 %v981
      %1045 = vmatpush1.bf16.msra.mxu0 %v980
      %1046 = vmatprep.subr.bf16.mxu0 %v983
      %1047 = vmatpush1.bf16.msra.mxu0 %v982
      %1048 = vmatprep.subr.bf16.mxu0 %v985
      %1049 = vmatpush1.bf16.msra.mxu0 %v984
      %1050 = vmatprep.subr.bf16.mxu0 %v987
      %1051 = vmatpush1.bf16.msra.mxu0 %v986
      %1052 = vmatprep.subr.bf16.mxu0 %v989
      %1053 = vmatpush1.bf16.msra.mxu0 %v988
      %1054 = vmatprep.subr.bf16.mxu0 %v991
      %1055 = vmatpush1.bf16.msra.mxu0 %v990
      %1056 = vmatprep.subr.bf16.mxu0 %v993
      %1057 = vmatpush1.bf16.msra.mxu0 %v992
      %1058 = vmatprep.subr.bf16.mxu0 %v995
      %1059 = vmatpush1.bf16.msra.mxu0 %v994
      %1060 = vmatprep.subr.bf16.mxu0 %v997
      %1061 = vmatpush1.bf16.msra.mxu0 %v996
      %1062 = vmatprep.subr.bf16.mxu0 %v999
      %1063 = vmatpush1.bf16.msra.mxu0 %v998
      %1064 = vmatprep.subr.bf16.mxu0 %v1001
      %1065 = vmatpush1.bf16.msra.mxu0 %v1000
      %1066 = vmatprep.subr.bf16.mxu0 %v1003
      %1067 = vmatpush1.bf16.msra.mxu0 %v1002
      %1068 = vmatprep.mubr.bf16.mxu0 %v817
      %1069 = vmatmul.mubr.bf16.gmra.mrb[0].mxu0 %v816
      %v1070 = vpop.f32.mrb[0].mxu0
      %v1071 = vadd.f32 %v869, %v1070
      %v1072 = vpop.f32.mrb[0].mxu0
      %v1073 = vadd.f32 %v873, %v1072
      %v1074 = vpop.f32.mrb[0].mxu0
      %v1075 = vadd.f32 %v869, %v1074
      %v1076 = vpop.f32.mrb[0].mxu0
      %v1077 = vadd.f32 %v873, %v1076
      %1078 = vmatprep.mubr.bf16.mxu0 %v819
      %1079 = vmatmul.mubr.bf16.gmra.mrb[0].mxu0 %v818
      %v1080 = vpop.f32.mrb[0].mxu0
      %v1081 = vadd.f32 %v869, %v1080
      %v1082 = vpop.f32.mrb[0].mxu0
      %v1083 = vadd.f32 %v873, %v1082
      %v1084 = vpop.f32.mrb[0].mxu0
      %v1085 = vadd.f32 %v869, %v1084
      %v1086 = vpop.f32.mrb[0].mxu0
      %v1087 = vadd.f32 %v873, %v1086
      %1088 = vmatprep.mubr.bf16.mxu0 %v821
      %1089 = vmatmul.mubr.bf16.gmra.mrb[0].mxu0 %v820
      %v1090 = vpop.f32.mrb[0].mxu0
      %v1091 = vadd.f32 %v869, %v1090
      %v1092 = vpop.f32.mrb[0].mxu0
      %v1093 = vadd.f32 %v873, %v1092
      %v1094 = vpop.f32.mrb[0].mxu0
      %v1095 = vadd.f32 %v869, %v1094
      %v1096 = vpop.f32.mrb[0].mxu0
      %v1097 = vadd.f32 %v873, %v1096
      %1098 = vmatprep.mubr.bf16.mxu0 %v823
      %1099 = vmatmul.mubr.bf16.gmra.mrb[0].mxu0 %v822
      %v1100 = vpop.f32.mrb[0].mxu0
      %v1101 = vadd.f32 %v869, %v1100
      %v1102 = vpop.f32.mrb[0].mxu0
      %v1103 = vadd.f32 %v873, %v1102
      %v1104 = vpop.f32.mrb[0].mxu0
      %v1105 = vadd.f32 %v869, %v1104
      %v1106 = vpop.f32.mrb[0].mxu0
      %v1107 = vadd.f32 %v873, %v1106
      %1108 = vmatprep.mubr.bf16.mxu0 %v825
      %1109 = vmatmul.mubr.bf16.gmra.mrb[0].mxu0 %v824
      %v1110 = vpop.f32.mrb[0].mxu0
      %v1111 = vadd.f32 %v869, %v1110
      %v1112 = vpop.f32.mrb[0].mxu0
      %v1113 = vadd.f32 %v873, %v1112
      %v1114 = vpop.f32.mrb[0].mxu0
      %v1115 = vadd.f32 %v869, %v1114
      %v1116 = vpop.f32.mrb[0].mxu0
      %v1117 = vadd.f32 %v873, %v1116
      %1118 = vmatprep.mubr.bf16.mxu0 %v827
      %1119 = vmatmul.mubr.bf16.gmra.mrb[0].mxu0 %v826
      %v1120 = vpop.f32.mrb[0].mxu0
      %v1121 = vadd.f32 %v869, %v1120
      %v1122 = vpop.f32.mrb[0].mxu0
      %v1123 = vadd.f32 %v873, %v1122
      %v1124 = vpop.f32.mrb[0].mxu0
      %v1125 = vadd.f32 %v869, %v1124
      %v1126 = vpop.f32.mrb[0].mxu0
      %v1127 = vadd.f32 %v873, %v1126
      %1128 = vmatprep.mubr.bf16.mxu0 %v829
      %1129 = vmatmul.mubr.bf16.gmra.mrb[0].mxu0 %v828
      %v1130 = vpop.f32.mrb[0].mxu0
      %v1131 = vadd.f32 %v869, %v1130
      %v1132 = vpop.f32.mrb[0].mxu0
      %v1133 = vadd.f32 %v873, %v1132
      %v1134 = vpop.f32.mrb[0].mxu0
      %v1135 = vadd.f32 %v869, %v1134
      %v1136 = vpop.f32.mrb[0].mxu0
      %v1137 = vadd.f32 %v873, %v1136
      %1138 = vmatprep.mubr.bf16.mxu0 %v831
      %1139 = vmatmul.mubr.bf16.gmra.mrb[0].mxu0 %v830
      %v1140 = vpop.f32.mrb[0].mxu0
      %v1141 = vadd.f32 %v869, %v1140
      %v1142 = vpop.f32.mrb[0].mxu0
      %v1143 = vadd.f32 %v873, %v1142
      %v1144 = vpop.f32.mrb[0].mxu0
      %v1145 = vadd.f32 %v869, %v1144
      %v1146 = vpop.f32.mrb[0].mxu0
      %v1147 = vadd.f32 %v873, %v1146
      %1148 = vdwg.mxu0
      %v1149 = vmul.f32 %v1071, %v1071
      %v1150 = vmul.f32 %v1073, %v1073
      %v1151 = vmul.f32 %v1075, %v1075
      %v1152 = vmul.f32 %v1077, %v1077
      %v1153 = vmul.f32 %v1081, %v1081
      %v1154 = vmul.f32 %v1083, %v1083
      %v1155 = vmul.f32 %v1085, %v1085
      %v1156 = vmul.f32 %v1087, %v1087
      %v1157 = vmul.f32 %v1091, %v1091
      %v1158 = vmul.f32 %v1093, %v1093
      %v1159 = vmul.f32 %v1095, %v1095
      %v1160 = vmul.f32 %v1097, %v1097
      %v1161 = vmul.f32 %v1101, %v1101
      %v1162 = vmul.f32 %v1103, %v1103
      %v1163 = vmul.f32 %v1105, %v1105
      %v1164 = vmul.f32 %v1107, %v1107
      %v1165 = vmul.f32 %v1111, %v1111
      %v1166 = vmul.f32 %v1113, %v1113
      %v1167 = vmul.f32 %v1115, %v1115
      %v1168 = vmul.f32 %v1117, %v1117
      %v1169 = vmul.f32 %v1121, %v1121
      %v1170 = vmul.f32 %v1123, %v1123
      %v1171 = vmul.f32 %v1125, %v1125
      %v1172 = vmul.f32 %v1127, %v1127
      %v1173 = vmul.f32 %v1131, %v1131
      %v1174 = vmul.f32 %v1133, %v1133
      %v1175 = vmul.f32 %v1135, %v1135
      %v1176 = vmul.f32 %v1137, %v1137
      %v1177 = vmul.f32 %v1141, %v1141
      %v1178 = vmul.f32 %v1143, %v1143
      %v1179 = vmul.f32 %v1145, %v1145
      %v1180 = vmul.f32 %v1147, %v1147
      %v1181 = vmul.f32 %v1071, %v1149
      %v1182 = vmul.f32 %v1073, %v1150
      %v1183 = vmul.f32 %v1075, %v1151
      %v1184 = vmul.f32 %v1077, %v1152
      %v1185 = vmul.f32 %v1081, %v1153
      %v1186 = vmul.f32 %v1083, %v1154
      %v1187 = vmul.f32 %v1085, %v1155
      %v1188 = vmul.f32 %v1087, %v1156
      %v1189 = vmul.f32 %v1091, %v1157
      %v1190 = vmul.f32 %v1093, %v1158
      %v1191 = vmul.f32 %v1095, %v1159
      %v1192 = vmul.f32 %v1097, %v1160
      %v1193 = vmul.f32 %v1101, %v1161
      %v1194 = vmul.f32 %v1103, %v1162
      %v1195 = vmul.f32 %v1105, %v1163
      %v1196 = vmul.f32 %v1107, %v1164
      %v1197 = vmul.f32 %v1111, %v1165
      %v1198 = vmul.f32 %v1113, %v1166
      %v1199 = vmul.f32 %v1115, %v1167
      %v1200 = vmul.f32 %v1117, %v1168
      %v1201 = vmul.f32 %v1121, %v1169
      %v1202 = vmul.f32 %v1123, %v1170
      %v1203 = vmul.f32 %v1125, %v1171
      %v1204 = vmul.f32 %v1127, %v1172
      %v1205 = vmul.f32 %v1131, %v1173
      %v1206 = vmul.f32 %v1133, %v1174
      %v1207 = vmul.f32 %v1135, %v1175
      %v1208 = vmul.f32 %v1137, %v1176
      %v1209 = vmul.f32 %v1141, %v1177
      %v1210 = vmul.f32 %v1143, %v1178
      %v1211 = vmul.f32 %v1145, %v1179
      %v1212 = vmul.f32 %v1147, %v1180
      %v1213 = vmul.f32 %v1181, 0.044715
      %v1214 = vmul.f32 %v1182, 0.044715
      %v1215 = vmul.f32 %v1183, 0.044715
      %v1216 = vmul.f32 %v1184, 0.044715
      %v1217 = vmul.f32 %v1185, 0.044715
      %v1218 = vmul.f32 %v1186, 0.044715
      %v1219 = vmul.f32 %v1187, 0.044715
      %v1220 = vmul.f32 %v1188, 0.044715
      %v1221 = vmul.f32 %v1189, 0.044715
      %v1222 = vmul.f32 %v1190, 0.044715
      %v1223 = vmul.f32 %v1191, 0.044715
      %v1224 = vmul.f32 %v1192, 0.044715
      %v1225 = vmul.f32 %v1193, 0.044715
      %v1226 = vmul.f32 %v1194, 0.044715
      %v1227 = vmul.f32 %v1195, 0.044715
      %v1228 = vmul.f32 %v1196, 0.044715
      %v1229 = vmul.f32 %v1197, 0.044715
      %v1230 = vmul.f32 %v1198, 0.044715
      %v1231 = vmul.f32 %v1199, 0.044715
      %v1232 = vmul.f32 %v1200, 0.044715
      %v1233 = vmul.f32 %v1201, 0.044715
      %v1234 = vmul.f32 %v1202, 0.044715
      %v1235 = vmul.f32 %v1203, 0.044715
      %v1236 = vmul.f32 %v1204, 0.044715
      %v1237 = vmul.f32 %v1205, 0.044715
      %v1238 = vmul.f32 %v1206, 0.044715
      %v1239 = vmul.f32 %v1207, 0.044715
      %v1240 = vmul.f32 %v1208, 0.044715
      %v1241 = vmul.f32 %v1209, 0.044715
      %v1242 = vmul.f32 %v1210, 0.044715
      %v1243 = vmul.f32 %v1211, 0.044715
      %v1244 = vmul.f32 %v1212, 0.044715
      %v1245 = vadd.f32 %v1071, %v1213
      %v1246 = vadd.f32 %v1073, %v1214
      %v1247 = vadd.f32 %v1075, %v1215
      %v1248 = vadd.f32 %v1077, %v1216
      %v1249 = vadd.f32 %v1081, %v1217
      %v1250 = vadd.f32 %v1083, %v1218
      %v1251 = vadd.f32 %v1085, %v1219
      %v1252 = vadd.f32 %v1087, %v1220
      %v1253 = vadd.f32 %v1091, %v1221
      %v1254 = vadd.f32 %v1093, %v1222
      %v1255 = vadd.f32 %v1095, %v1223
      %v1256 = vadd.f32 %v1097, %v1224
      %v1257 = vadd.f32 %v1101, %v1225
      %v1258 = vadd.f32 %v1103, %v1226
      %v1259 = vadd.f32 %v1105, %v1227
      %v1260 = vadd.f32 %v1107, %v1228
      %v1261 = vadd.f32 %v1111, %v1229
      %v1262 = vadd.f32 %v1113, %v1230
      %v1263 = vadd.f32 %v1115, %v1231
      %v1264 = vadd.f32 %v1117, %v1232
      %v1265 = vadd.f32 %v1121, %v1233
      %v1266 = vadd.f32 %v1123, %v1234
      %v1267 = vadd.f32 %v1125, %v1235
      %v1268 = vadd.f32 %v1127, %v1236
      %v1269 = vadd.f32 %v1131, %v1237
      %v1270 = vadd.f32 %v1133, %v1238
      %v1271 = vadd.f32 %v1135, %v1239
      %v1272 = vadd.f32 %v1137, %v1240
      %v1273 = vadd.f32 %v1141, %v1241
      %v1274 = vadd.f32 %v1143, %v1242
      %v1275 = vadd.f32 %v1145, %v1243
      %v1276 = vadd.f32 %v1147, %v1244
      %v1277 = vmul.f32 %v1245, 0.7978846
      %v1278 = vmul.f32 %v1246, 0.7978846
      %v1279 = vmul.f32 %v1247, 0.7978846
      %v1280 = vmul.f32 %v1248, 0.7978846
      %v1281 = vmul.f32 %v1249, 0.7978846
      %v1282 = vmul.f32 %v1250, 0.7978846
      %v1283 = vmul.f32 %v1251, 0.7978846
      %v1284 = vmul.f32 %v1252, 0.7978846
      %v1285 = vmul.f32 %v1253, 0.7978846
      %v1286 = vmul.f32 %v1254, 0.7978846
      %v1287 = vmul.f32 %v1255, 0.7978846
      %v1288 = vmul.f32 %v1256, 0.7978846
      %v1289 = vmul.f32 %v1257, 0.7978846
      %v1290 = vmul.f32 %v1258, 0.7978846
      %v1291 = vmul.f32 %v1259, 0.7978846
      %v1292 = vmul.f32 %v1260, 0.7978846
      %v1293 = vmul.f32 %v1261, 0.7978846
      %v1294 = vmul.f32 %v1262, 0.7978846
      %v1295 = vmul.f32 %v1263, 0.7978846
      %v1296 = vmul.f32 %v1264, 0.7978846
      %v1297 = vmul.f32 %v1265, 0.7978846
      %v1298 = vmul.f32 %v1266, 0.7978846
      %v1299 = vmul.f32 %v1267, 0.7978846
      %v1300 = vmul.f32 %v1268, 0.7978846
      %v1301 = vmul.f32 %v1269, 0.7978846
      %v1302 = vmul.f32 %v1270, 0.7978846
      %v1303 = vmul.f32 %v1271, 0.7978846
      %v1304 = vmul.f32 %v1272, 0.7978846
      %v1305 = vmul.f32 %v1273, 0.7978846
      %v1306 = vmul.f32 %v1274, 0.7978846
      %v1307 = vmul.f32 %v1275, 0.7978846
      %v1308 = vmul.f32 %v1276, 0.7978846
      %v1309 = vtanh.pop %v1277
      %v1310 = vtanh.pop %v1278
      %v1311 = vtanh.pop %v1279
      %v1312 = vtanh.pop %v1280
      %v1313 = vtanh.pop %v1281
      %v1314 = vtanh.pop %v1282
      %v1315 = vtanh.pop %v1283
      %v1316 = vtanh.pop %v1284
      %v1317 = vtanh.pop %v1285
      %v1318 = vtanh.pop %v1286
      %v1319 = vtanh.pop %v1287
      %v1320 = vtanh.pop %v1288
      %v1321 = vtanh.pop %v1289
      %v1322 = vtanh.pop %v1290
      %v1323 = vtanh.pop %v1291
      %v1324 = vtanh.pop %v1292
      %v1325 = vtanh.pop %v1293
      %v1326 = vtanh.pop %v1294
      %v1327 = vtanh.pop %v1295
      %v1328 = vtanh.pop %v1296
      %v1329 = vtanh.pop %v1297
      %v1330 = vtanh.pop %v1298
      %v1331 = vtanh.pop %v1299
      %v1332 = vtanh.pop %v1300
      %v1333 = vtanh.pop %v1301
      %v1334 = vtanh.pop %v1302
      %v1335 = vtanh.pop %v1303
      %v1336 = vtanh.pop %v1304
      %v1337 = vtanh.pop %v1305
      %v1338 = vtanh.pop %v1306
      %v1339 = vtanh.pop %v1307
      %v1340 = vtanh.pop %v1308
      %v1341 = vadd.f32 %v1309, 1.0
      %v1342 = vadd.f32 %v1310, 1.0
      %v1343 = vadd.f32 %v1311, 1.0
      %v1344 = vadd.f32 %v1312, 1.0
      %v1345 = vadd.f32 %v1313, 1.0
      %v1346 = vadd.f32 %v1314, 1.0
      %v1347 = vadd.f32 %v1315, 1.0
      %v1348 = vadd.f32 %v1316, 1.0
      %v1349 = vadd.f32 %v1317, 1.0
      %v1350 = vadd.f32 %v1318, 1.0
      %v1351 = vadd.f32 %v1319, 1.0
      %v1352 = vadd.f32 %v1320, 1.0
      %v1353 = vadd.f32 %v1321, 1.0
      %v1354 = vadd.f32 %v1322, 1.0
      %v1355 = vadd.f32 %v1323, 1.0
      %v1356 = vadd.f32 %v1324, 1.0
      %v1357 = vadd.f32 %v1325, 1.0
      %v1358 = vadd.f32 %v1326, 1.0
      %v1359 = vadd.f32 %v1327, 1.0
      %v1360 = vadd.f32 %v1328, 1.0
      %v1361 = vadd.f32 %v1329, 1.0
      %v1362 = vadd.f32 %v1330, 1.0
      %v1363 = vadd.f32 %v1331, 1.0
      %v1364 = vadd.f32 %v1332, 1.0
      %v1365 = vadd.f32 %v1333, 1.0
      %v1366 = vadd.f32 %v1334, 1.0
      %v1367 = vadd.f32 %v1335, 1.0
      %v1368 = vadd.f32 %v1336, 1.0
      %v1369 = vadd.f32 %v1337, 1.0
      %v1370 = vadd.f32 %v1338, 1.0
      %v1371 = vadd.f32 %v1339, 1.0
      %v1372 = vadd.f32 %v1340, 1.0
      %v1373 = vmul.f32 %v1341, 0.5
      %v1374 = vmul.f32 %v1342, 0.5
      %v1375 = vmul.f32 %v1343, 0.5
      %v1376 = vmul.f32 %v1344, 0.5
      %v1377 = vmul.f32 %v1345, 0.5
      %v1378 = vmul.f32 %v1346, 0.5
      %v1379 = vmul.f32 %v1347, 0.5
      %v1380 = vmul.f32 %v1348, 0.5
      %v1381 = vmul.f32 %v1349, 0.5
      %v1382 = vmul.f32 %v1350, 0.5
      %v1383 = vmul.f32 %v1351, 0.5
      %v1384 = vmul.f32 %v1352, 0.5
      %v1385 = vmul.f32 %v1353, 0.5
      %v1386 = vmul.f32 %v1354, 0.5
      %v1387 = vmul.f32 %v1355, 0.5
      %v1388 = vmul.f32 %v1356, 0.5
      %v1389 = vmul.f32 %v1357, 0.5
      %v1390 = vmul.f32 %v1358, 0.5
      %v1391 = vmul.f32 %v1359, 0.5
      %v1392 = vmul.f32 %v1360, 0.5
      %v1393 = vmul.f32 %v1361, 0.5
      %v1394 = vmul.f32 %v1362, 0.5
      %v1395 = vmul.f32 %v1363, 0.5
      %v1396 = vmul.f32 %v1364, 0.5
      %v1397 = vmul.f32 %v1365, 0.5
      %v1398 = vmul.f32 %v1366, 0.5
      %v1399 = vmul.f32 %v1367, 0.5
      %v1400 = vmul.f32 %v1368, 0.5
      %v1401 = vmul.f32 %v1369, 0.5
      %v1402 = vmul.f32 %v1370, 0.5
      %v1403 = vmul.f32 %v1371, 0.5
      %v1404 = vmul.f32 %v1372, 0.5
      %v1405 = vmul.f32 %v1071, %v1373
      %v1406 = vmul.f32 %v1073, %v1374
      %v1407 = vmul.f32 %v1075, %v1375
      %v1408 = vmul.f32 %v1077, %v1376
      %v1409 = vmul.f32 %v1081, %v1377
      %v1410 = vmul.f32 %v1083, %v1378
      %v1411 = vmul.f32 %v1085, %v1379
      %v1412 = vmul.f32 %v1087, %v1380
      %v1413 = vmul.f32 %v1091, %v1381
      %v1414 = vmul.f32 %v1093, %v1382
      %v1415 = vmul.f32 %v1095, %v1383
      %v1416 = vmul.f32 %v1097, %v1384
      %v1417 = vmul.f32 %v1101, %v1385
      %v1418 = vmul.f32 %v1103, %v1386
      %v1419 = vmul.f32 %v1105, %v1387
      %v1420 = vmul.f32 %v1107, %v1388
      %v1421 = vmul.f32 %v1111, %v1389
      %v1422 = vmul.f32 %v1113, %v1390
      %v1423 = vmul.f32 %v1115, %v1391
      %v1424 = vmul.f32 %v1117, %v1392
      %v1425 = vmul.f32 %v1121, %v1393
      %v1426 = vmul.f32 %v1123, %v1394
      %v1427 = vmul.f32 %v1125, %v1395
      %v1428 = vmul.f32 %v1127, %v1396
      %v1429 = vmul.f32 %v1131, %v1397
      %v1430 = vmul.f32 %v1133, %v1398
      %v1431 = vmul.f32 %v1135, %v1399
      %v1432 = vmul.f32 %v1137, %v1400
      %v1433 = vmul.f32 %v1141, %v1401
      %v1434 = vmul.f32 %v1143, %v1402
      %v1435 = vmul.f32 %v1145, %v1403
      %v1436 = vmul.f32 %v1147, %v1404
      %v1437 = vpack.c.bf16 %v1407, %v1405
      %v1438 = vpack.c.bf16 %v1408, %v1406
      %v1439 = vpack.c.bf16 %v1411, %v1409
      %v1440 = vpack.c.bf16 %v1412, %v1410
      %v1441 = vpack.c.bf16 %v1415, %v1413
      %v1442 = vpack.c.bf16 %v1416, %v1414
      %v1443 = vpack.c.bf16 %v1419, %v1417
      %v1444 = vpack.c.bf16 %v1420, %v1418
      %v1445 = vpack.c.bf16 %v1423, %v1421
      %v1446 = vpack.c.bf16 %v1424, %v1422
      %v1447 = vpack.c.bf16 %v1427, %v1425
      %v1448 = vpack.c.bf16 %v1428, %v1426
      %v1449 = vpack.c.bf16 %v1431, %v1429
      %v1450 = vpack.c.bf16 %v1432, %v1430
      %v1451 = vpack.c.bf16 %v1435, %v1433
      %v1452 = vpack.c.bf16 %v1436, %v1434
      %v1453 = vld [vmem:[%s5] sm:$0xf]
      %v1454 = vld [vmem:[%s5 + $0x4] sm:$0xf]
      %v1455 = vld [vmem:[%s5 + $0x8] sm:$0xf]
      %v1456 = vld [vmem:[%s5 + $0xc] sm:$0xf]
      %v1457 = vld [vmem:[%s5 + $0x10] sm:$0xf]
      %v1458 = vld [vmem:[%s5 + $0x14] sm:$0xf]
      %v1459 = vld [vmem:[%s5 + $0x18] sm:$0xf]
      %v1460 = vld [vmem:[%s5 + $0x1c] sm:$0xf]
      %v1461 = vld [vmem:[%s5 + $0x20] sm:$0xf]
      %v1462 = vld [vmem:[%s5 + $0x24] sm:$0xf]
      %v1463 = vld [vmem:[%s5 + $0x28] sm:$0xf]
      %v1464 = vld [vmem:[%s5 + $0x2c] sm:$0xf]
      %v1465 = vld [vmem:[%s5 + $0x30] sm:$0xf]
      %v1466 = vld [vmem:[%s5 + $0x34] sm:$0xf]
      %v1467 = vld [vmem:[%s5 + $0x38] sm:$0xf]
      %v1468 = vld [vmem:[%s5 + $0x3c] sm:$0xf]
      %v1469 = vld [vmem:[%s5 + $0x40] sm:$0xf]
      %v1470 = vld [vmem:[%s5 + $0x44] sm:$0xf]
      %v1471 = vld [vmem:[%s5 + $0x48] sm:$0xf]
      %v1472 = vld [vmem:[%s5 + $0x4c] sm:$0xf]
      %v1473 = vld [vmem:[%s5 + $0x50] sm:$0xf]
      %v1474 = vld [vmem:[%s5 + $0x54] sm:$0xf]
      %v1475 = vld [vmem:[%s5 + $0x58] sm:$0xf]
      %v1476 = vld [vmem:[%s5 + $0x5c] sm:$0xf]
      %v1477 = vld [vmem:[%s5 + $0x60] sm:$0xf]
      %v1478 = vld [vmem:[%s5 + $0x64] sm:$0xf]
      %v1479 = vld [vmem:[%s5 + $0x68] sm:$0xf]
      %v1480 = vld [vmem:[%s5 + $0x6c] sm:$0xf]
      %v1481 = vld [vmem:[%s5 + $0x70] sm:$0xf]
      %v1482 = vld [vmem:[%s5 + $0x74] sm:$0xf]
      %v1483 = vld [vmem:[%s5 + $0x78] sm:$0xf]
      %v1484 = vld [vmem:[%s5 + $0x7c] sm:$0xf]
      %v1485 = vld [vmem:[%s6] sm:$0x1]
      %v1487 = vlaneseq
      %v1488 = vshrl.u32 %v1487, 7
      %v1489 = vsub.s32 0, %v1488
      %v1490 = vrot.slane %v1485, %v1489
      %v1524 = vunpack.c.l.b16 %v1453
      %v1525 = vunpack.c.l.b16 %v1454
      %v1526 = vunpack.c.l.b16 %v1455
      %v1527 = vunpack.c.l.b16 %v1456
      %v1528 = vunpack.c.l.b16 %v1457
      %v1529 = vunpack.c.l.b16 %v1458
      %v1530 = vunpack.c.l.b16 %v1459
      %v1531 = vunpack.c.l.b16 %v1460
      %v1532 = vunpack.c.l.b16 %v1461
      %v1533 = vunpack.c.l.b16 %v1462
      %v1534 = vunpack.c.l.b16 %v1463
      %v1535 = vunpack.c.l.b16 %v1464
      %v1536 = vunpack.c.l.b16 %v1465
      %v1537 = vunpack.c.l.b16 %v1466
      %v1538 = vunpack.c.l.b16 %v1467
      %v1539 = vunpack.c.l.b16 %v1468
      %v1540 = vunpack.c.l.b16 %v1469
      %v1541 = vunpack.c.l.b16 %v1470
      %v1542 = vunpack.c.l.b16 %v1471
      %v1543 = vunpack.c.l.b16 %v1472
      %v1544 = vunpack.c.l.b16 %v1473
      %v1545 = vunpack.c.l.b16 %v1474
      %v1546 = vunpack.c.l.b16 %v1475
      %v1547 = vunpack.c.l.b16 %v1476
      %v1548 = vunpack.c.l.b16 %v1477
      %v1549 = vunpack.c.l.b16 %v1478
      %v1550 = vunpack.c.l.b16 %v1479
      %v1551 = vunpack.c.l.b16 %v1480
      %v1552 = vunpack.c.l.b16 %v1481
      %v1553 = vunpack.c.l.b16 %v1482
      %v1554 = vunpack.c.l.b16 %v1483
      %v1555 = vunpack.c.l.b16 %v1484
      %v1556 = vpack.c.b16 %v1525, %v1524
      %v1557 = vpack.c.b16 %v1527, %v1526
      %v1558 = vpack.c.b16 %v1529, %v1528
      %v1559 = vpack.c.b16 %v1531, %v1530
      %v1560 = vpack.c.b16 %v1533, %v1532
      %v1561 = vpack.c.b16 %v1535, %v1534
      %v1562 = vpack.c.b16 %v1537, %v1536
      %v1563 = vpack.c.b16 %v1539, %v1538
      %v1564 = vpack.c.b16 %v1541, %v1540
      %v1565 = vpack.c.b16 %v1543, %v1542
      %v1566 = vpack.c.b16 %v1545, %v1544
      %v1567 = vpack.c.b16 %v1547, %v1546
      %v1568 = vpack.c.b16 %v1549, %v1548
      %v1569 = vpack.c.b16 %v1551, %v1550
      %v1570 = vpack.c.b16 %v1553, %v1552
      %v1571 = vpack.c.b16 %v1555, %v1554
      %1588 = vmatprep.subr.bf16.mxu0 0
      %1589 = vmatpush1.bf16.msra.mxu0 %v1556
      %1590 = vmatprep.subr.bf16.mxu0 0
      %1591 = vmatpush1.bf16.msra.mxu0 %v1557
      %1592 = vmatprep.subr.bf16.mxu0 0
      %1593 = vmatpush1.bf16.msra.mxu0 %v1558
      %1594 = vmatprep.subr.bf16.mxu0 0
      %1595 = vmatpush1.bf16.msra.mxu0 %v1559
      %1596 = vmatprep.subr.bf16.mxu0 0
      %1597 = vmatpush1.bf16.msra.mxu0 %v1560
      %1598 = vmatprep.subr.bf16.mxu0 0
      %1599 = vmatpush1.bf16.msra.mxu0 %v1561
      %1600 = vmatprep.subr.bf16.mxu0 0
      %1601 = vmatpush1.bf16.msra.mxu0 %v1562
      %1602 = vmatprep.subr.bf16.mxu0 0
      %1603 = vmatpush1.bf16.msra.mxu0 %v1563
      %1604 = vmatprep.subr.bf16.mxu0 0
      %1605 = vmatpush1.bf16.msra.mxu0 %v1564
      %1606 = vmatprep.subr.bf16.mxu0 0
      %1607 = vmatpush1.bf16.msra.mxu0 %v1565
      %1608 = vmatprep.subr.bf16.mxu0 0
      %1609 = vmatpush1.bf16.msra.mxu0 %v1566
      %1610 = vmatprep.subr.bf16.mxu0 0
      %1611 = vmatpush1.bf16.msra.mxu0 %v1567
      %1612 = vmatprep.subr.bf16.mxu0 0
      %1613 = vmatpush1.bf16.msra.mxu0 %v1568
      %1614 = vmatprep.subr.bf16.mxu0 0
      %1615 = vmatpush1.bf16.msra.mxu0 %v1569
      %1616 = vmatprep.subr.bf16.mxu0 0
      %1617 = vmatpush1.bf16.msra.mxu0 %v1570
      %1618 = vmatprep.subr.bf16.mxu0 0
      %1619 = vmatpush1.bf16.msra.mxu0 %v1571
      %1620 = vmatprep.mubr.bf16.mxu0 %v1438
      %1621 = vmatmul.mubr.bf16.gmra.mrb[0].mxu0 %v1437
      %v1622 = vpop.f32.mrb[0].mxu0
      %v1623 = vadd.f32 %v1490, %v1622
      %v1624 = vpop.f32.mrb[0].mxu0
      %v1625 = vpop.f32.mrb[0].mxu0
      %v1626 = vadd.f32 %v1490, %v1625
      %v1627 = vpop.f32.mrb[0].mxu0
      %1628 = vmatprep.mubr.bf16.mxu0 %v1440
      %1629 = vmatmul.mubr.bf16.gmra.mrb[0].mxu0 %v1439
      %v1630 = vpop.f32.mrb[0].mxu0
      %v1631 = vadd.f32 %v1490, %v1630
      %v1632 = vpop.f32.mrb[0].mxu0
      %v1633 = vpop.f32.mrb[0].mxu0
      %v1634 = vadd.f32 %v1490, %v1633
      %v1635 = vpop.f32.mrb[0].mxu0
      %1636 = vmatprep.mubr.bf16.mxu0 %v1442
      %1637 = vmatmul.mubr.bf16.gmra.mrb[0].mxu0 %v1441
      %v1638 = vpop.f32.mrb[0].mxu0
      %v1639 = vadd.f32 %v1490, %v1638
      %v1640 = vpop.f32.mrb[0].mxu0
      %v1641 = vpop.f32.mrb[0].mxu0
      %v1642 = vadd.f32 %v1490, %v1641
      %v1643 = vpop.f32.mrb[0].mxu0
      %1644 = vmatprep.mubr.bf16.mxu0 %v1444
      %1645 = vmatmul.mubr.bf16.gmra.mrb[0].mxu0 %v1443
      %v1646 = vpop.f32.mrb[0].mxu0
      %v1647 = vadd.f32 %v1490, %v1646
      %v1648 = vpop.f32.mrb[0].mxu0
      %v1649 = vpop.f32.mrb[0].mxu0
      %v1650 = vadd.f32 %v1490, %v1649
      %v1651 = vpop.f32.mrb[0].mxu0
      %1652 = vmatprep.mubr.bf16.mxu0 %v1446
      %1653 = vmatmul.mubr.bf16.gmra.mrb[0].mxu0 %v1445
      %v1654 = vpop.f32.mrb[0].mxu0
      %v1655 = vadd.f32 %v1490, %v1654
      %v1656 = vpop.f32.mrb[0].mxu0
      %v1657 = vpop.f32.mrb[0].mxu0
      %v1658 = vadd.f32 %v1490, %v1657
      %v1659 = vpop.f32.mrb[0].mxu0
      %1660 = vmatprep.mubr.bf16.mxu0 %v1448
      %1661 = vmatmul.mubr.bf16.gmra.mrb[0].mxu0 %v1447
      %v1662 = vpop.f32.mrb[0].mxu0
      %v1663 = vadd.f32 %v1490, %v1662
      %v1664 = vpop.f32.mrb[0].mxu0
      %v1665 = vpop.f32.mrb[0].mxu0
      %v1666 = vadd.f32 %v1490, %v1665
      %v1667 = vpop.f32.mrb[0].mxu0
      %1668 = vmatprep.mubr.bf16.mxu0 %v1450
      %1669 = vmatmul.mubr.bf16.gmra.mrb[0].mxu0 %v1449
      %v1670 = vpop.f32.mrb[0].mxu0
      %v1671 = vadd.f32 %v1490, %v1670
      %v1672 = vpop.f32.mrb[0].mxu0
      %v1673 = vpop.f32.mrb[0].mxu0
      %v1674 = vadd.f32 %v1490, %v1673
      %v1675 = vpop.f32.mrb[0].mxu0
      %1676 = vmatprep.mubr.bf16.mxu0 %v1452
      %1677 = vmatmul.mubr.bf16.gmra.mrb[0].mxu0 %v1451
      %v1678 = vpop.f32.mrb[0].mxu0
      %v1679 = vadd.f32 %v1490, %v1678
      %v1680 = vpop.f32.mrb[0].mxu0
      %v1681 = vpop.f32.mrb[0].mxu0
      %v1682 = vadd.f32 %v1490, %v1681
      %v1683 = vpop.f32.mrb[0].mxu0
      %1684 = vdwg.mxu0
      %vm1685 = vcmask 261120
      %1686 = vst.msk [vmem:[%s280] sm:$0xff] %vm1685, %v1623
      %1687 = vst.msk [vmem:[%s280 + $0x8] sm:$0xff] %vm1685, %v1626
      %1688 = vst.msk [vmem:[%s280 + $0x10] sm:$0xff] %vm1685, %v1631
      %1689 = vst.msk [vmem:[%s280 + $0x18] sm:$0xff] %vm1685, %v1634
      %1690 = vst.msk [vmem:[%s280 + $0x20] sm:$0xff] %vm1685, %v1639
      %1691 = vst.msk [vmem:[%s280 + $0x28] sm:$0xff] %vm1685, %v1642
      %1692 = vst.msk [vmem:[%s280 + $0x30] sm:$0xff] %vm1685, %v1647
      %1693 = vst.msk [vmem:[%s280 + $0x38] sm:$0xff] %vm1685, %v1650
      %1694 = vst.msk [vmem:[%s280 + $0x40] sm:$0xff] %vm1685, %v1655
      %1695 = vst.msk [vmem:[%s280 + $0x48] sm:$0xff] %vm1685, %v1658
      %1696 = vst.msk [vmem:[%s280 + $0x50] sm:$0xff] %vm1685, %v1663
      %1697 = vst.msk [vmem:[%s280 + $0x58] sm:$0xff] %vm1685, %v1666
      %1698 = vst.msk [vmem:[%s280 + $0x60] sm:$0xff] %vm1685, %v1671
      %1699 = vst.msk [vmem:[%s280 + $0x68] sm:$0xff] %vm1685, %v1674
      %1700 = vst.msk [vmem:[%s280 + $0x70] sm:$0xff] %vm1685, %v1679
      %1701 = vst.msk [vmem:[%s280 + $0x78] sm:$0xff] %vm1685, %v1682
      %s1702 = smul.u32 16, %s18
      %p1703 = scmp.lt.s32.totalorder %s1702, 31
      %s1704 = scalar_select %p1703, %s1702, 31
      %s1705 = smul.addr %s1704, 8
      %s1706 = scalar_lea.vmem %s7, %s1705
      // Predicated region
      $region49: #{_forward_impl.1} parent=47 // pred_check
        %p1707 = pneg %p188
      $region50: #{_forward_impl.1} parent=47 // pred_check_branch
        %1709 = sbr.rel (%p1707) target = $region52
      $region51: #{_forward_impl.1} parent=47 // pred_region
        %s1710 = smul.u32 16, %s18
      $region52: #{_forward_impl.1} parent=47 // pred_fallthru
        _
    $region48: #{_forward_impl.1} parent=5 // pred_fallthru
      _
    %p1711 = scmp.le.s32.totalorder 2, %s13
    // Predicated region
    $region53: #{_forward_impl.1} parent=5 // pred_check
      %p1712 = pneg %p1711
    $region54: #{_forward_impl.1} parent=5 // pred_check_branch
      %1714 = sbr.rel (%p1712) target = $region56
    $region55: #{_forward_impl.1} parent=5 // pred_region
      %s1715 = ssub.s32 %s13, 2
      // Predicated region
      $region57: #{_forward_impl.1} parent=55 // pred_check
        %p1716 = pneg %p194
      $region58: #{_forward_impl.1} parent=55 // pred_check_branch
        %1718 = sbr.rel (%p1716) target = $region60
      $region59: #{_forward_impl.1} parent=55 // pred_region
        %s1719 = smul.u32 16, %s19
        %p1720 = scmp.lt.s32.totalorder %s1719, 31
        %s1721 = scalar_select %p1720, %s1719, 31
        %s1722 = smul.addr %s1721, 8
        %s1723 = scalar_lea.vmem %s7, %s1722
      $region60: #{_forward_impl.1} parent=55 // pred_fallthru
        _
    $region56: #{_forward_impl.1} parent=5 // pred_fallthru
      _
  $region6: #{_forward_impl.1} parent=0 // loop_footer
    %s17 = sadd.s32 1, %s13
  $region7: #{_forward_impl.1} parent=0 // loop_footer_branch
    %12 = sbr.rel target = $region3
  $region8: #{_forward_impl.1} parent=0 // loop_exit
    _

</llo_original>
